<compile_context>
chip_gen: v7x
topology: tpu7x:2x2x1
jax: 0.10.0
libtpu: 0.0.40
codegen_flags: <defaults>
</compile_context>

<pallas_src>
import jax
import jax.numpy as jnp
from jax import lax
from jax.experimental import pallas as pl
from jax.experimental.pallas import tpu as pltpu

D = 768          # fixed by nn.Linear(768, 768)
EPS = 1e-12      # F.normalize default eps


def _round_up(n, m):
    return ((n + m - 1) // m) * m


def _pick_tb(B):
    """Batch (M) tile size.

    - B >= 512: 256-row tiles (fills the 2x256 MXU on v6e/v7x, fine on v5e's 4x128).
    - 256 <= B < 512: 128-row tiles so the grid keeps >= 2 'parallel' steps
      (v7x shards the parallel axis across its 2 TensorCores).
    - 8 < B < 256: split into ~2 tiles rounded up to a sublane multiple of 8
      (2 steps = megacore work on v7x; the ~0.35us/step overhead is negligible).
    - B <= 8: one full-array block (block dim == array dim is always legal).
    VMEM is never the constraint: at tb=256 the x/out tiles are 0.75 MiB each
    (x2 double-buffers) plus the ~1.1 MiB resident bf16 weight.
    """
    if B <= 8:
        return B
    if B >= 512:
        return 256
    if B >= 256:
        return 128
    return min(_round_up(B, 8), max(8, _round_up(pl.cdiv(B, 2), 8)))


def user_model_kernel(x_ref, w_ref, b_ref, o_ref):
    x = x_ref[...]                                    # (tb, D) f32
    w = w_ref[...]                                    # (D, D)  bf16, resident across grid
    b = b_ref[...]                                    # (1, D)  f32
    # bf16 x bf16 -> f32 accumulation on the MXU.
    y = jnp.dot(x.astype(jnp.bfloat16), w, preferred_element_type=jnp.float32)
    y = y + b + x                                     # bias + residual, f32
    # L2 normalize along the feature dim (PyTorch dim=1):
    #   y / max(||y||, eps) == y * rsqrt(max(||y||^2, eps^2))
    sq = jnp.sum(y * y, axis=-1, keepdims=True)       # (tb, 1)  XLU cross-lane reduce
    inv = lax.rsqrt(jnp.maximum(sq, EPS * EPS))       # EUP rsqrt, no per-element divide
    o_ref[...] = (y * inv).astype(o_ref.dtype)


def user_model_forward(user_embeddings, weight, bias, *, tb=None):
    """user_embeddings: (B, 768) f32; weight: (768, 768) PyTorch layout [out, in];
    bias: (768,). Returns F.normalize(x @ W.T + b + x, p=2, dim=1)."""
    B, Din = user_embeddings.shape
    assert Din == D, f"expected feature dim {D}, got {Din}"
    if tb is None:
        tb = _pick_tb(B)
    w_t = jnp.transpose(weight).astype(jnp.bfloat16)   # [in, out] bf16 for the MXU
    bias2d = bias.reshape(1, D).astype(jnp.float32)
    grid = (pl.cdiv(B, tb),)          # non-divisible B: tail tile handled by Pallas
    return pl.pallas_call(
        user_model_kernel,
        out_shape=jax.ShapeDtypeStruct((B, D), user_embeddings.dtype),
        grid_spec=pltpu.PrefetchScalarGridSpec(
            num_scalar_prefetch=0,
            grid=grid,
            in_specs=[
                pl.BlockSpec((tb, D), lambda i: (i, 0)),   # x tile (rows on sublanes)
                pl.BlockSpec((D, D), lambda i: (0, 0)),    # full weight, resident
                pl.BlockSpec((1, D), lambda i: (0, 0)),    # bias row, resident
            ],
            out_specs=pl.BlockSpec((tb, D), lambda i: (i, 0)),
        ),
        compiler_params=pltpu.CompilerParams(
            dimension_semantics=("parallel",)),            # megacore sharding on v7x
    )(user_embeddings, w_t, bias2d)


def _reference_f32(x, weight, bias):
    """Exact PyTorch-semantics reference in f32."""
    y = x @ weight.T + bias + x
    n = jnp.sqrt(jnp.sum(y * y, axis=1, keepdims=True))
    return y / jnp.maximum(n, EPS)


def _reference_bf16_matmul(x, weight, bias):
    """Reference mirroring the kernel numerics (bf16 MXU inputs, f32 elsewhere)."""
    y = jnp.dot(x.astype(jnp.bfloat16), weight.T.astype(jnp.bfloat16),
                preferred_element_type=jnp.float32) + bias + x
    n = jnp.sqrt(jnp.sum(y * y, axis=1, keepdims=True))
    return y / jnp.maximum(n, EPS)


if __name__ == "__main__":
    key = jax.random.PRNGKey(0)

    # Deterministic init matching the PyTorch module: eye_ weight, zero bias.
    weight = jnp.eye(D, dtype=jnp.float32)       # nn.init.eye_(m.weight)
    bias = jnp.zeros((D,), dtype=jnp.float32)    # nn.init.constant_(m.bias, 0)

    ok = True
    # B=48: tb=24, grid=(2,) exact tiles; B=50: tb=32, grid=(2,) with a partial tail tile.
    for B in (48, 50):
        x = jax.random.normal(jax.random.fold_in(key, B), (B, D), dtype=jnp.float32)
        out = jax.block_until_ready(user_model_forward(x, weight, bias))
        ref_exact = _reference_bf16_matmul(x, weight, bias)   # same numerics as kernel
        ref_f32 = _reference_f32(x, weight, bias)             # PyTorch f32 semantics
        ok &= bool(jnp.allclose(out, ref_exact, atol=1e-5, rtol=1e-5))
        ok &= bool(jnp.allclose(out, ref_f32, atol=3e-3, rtol=0.0))
    assert ok, "mismatch vs reference"

    print("KERNEL_OK")
</pallas_src>

<mosaic_0001>
module attributes {stable_mosaic.version = 11 : i64} {
  func.func @user_model_kernel(%arg0: i32, %arg1: memref<24x768xf32, #tpu.memory_space<vmem>>, %arg2: memref<768x768xbf16, #tpu.memory_space<vmem>>, %arg3: memref<1x768xf32, #tpu.memory_space<vmem>>, %arg4: memref<24x768xf32, #tpu.memory_space<vmem>>) attributes {dimension_semantics = [#tpu.dimension_semantics<parallel>], iteration_bounds = array<i64: 2>, scalar_prefetch = 0 : i64, scratch_operands = 0 : i64, tpu.core_type = #tpu.core_type<tc>, window_params = [{transform_indices = @transform_0, window_bounds = array<i64: 24, 768>}, {pipeline_mode = #tpu.pipeline_mode<synchronous>, transform_indices = @transform_1, window_bounds = array<i64: 768, 768>}, {pipeline_mode = #tpu.pipeline_mode<synchronous>, transform_indices = @transform_2, window_bounds = array<i64: 1, 768>}, {transform_indices = @transform_3, window_bounds = array<i64: 24, 768>}]} {
    %c0 = arith.constant 0 : index
    %c0_0 = arith.constant 0 : index
    %0 = vector.load %arg1[%c0, %c0_0] : memref<24x768xf32, #tpu.memory_space<vmem>>, vector<24x768xf32>
    %c0_1 = arith.constant 0 : index
    %c0_2 = arith.constant 0 : index
    %1 = vector.load %arg2[%c0_1, %c0_2] : memref<768x768xbf16, #tpu.memory_space<vmem>>, vector<768x768xbf16>
    %c0_3 = arith.constant 0 : index
    %c0_4 = arith.constant 0 : index
    %2 = vector.load %arg3[%c0_3, %c0_4] : memref<1x768xf32, #tpu.memory_space<vmem>>, vector<1x768xf32>
    %3 = arith.truncf %0 : vector<24x768xf32> to vector<24x768xbf16>
    %cst = arith.constant dense<0.000000e+00> : vector<24x768xf32>
    %4 = tpu.matmul %3, %1, %cst {dimension_numbers = #tpu.dot_dimension_numbers<[1], [0], [0], [1], [0, 0, 1, 1], [], []>} : vector<24x768xbf16>, vector<768x768xbf16>, vector<24x768xf32> -> vector<24x768xf32>
    %5 = vector.broadcast %2 : vector<1x768xf32> to vector<24x768xf32>
    %6 = arith.addf %4, %5 : vector<24x768xf32>
    %7 = arith.addf %6, %0 : vector<24x768xf32>
    %8 = arith.mulf %7, %7 : vector<24x768xf32>
    %cst_5 = arith.constant dense<0.000000e+00> : vector<24xf32>
    %9 = vector.multi_reduction <add>, %8, %cst_5 [1] : vector<24x768xf32> to vector<24xf32>
    %10 = vector.shape_cast %9 : vector<24xf32> to vector<24x1xf32>
    %cst_6 = arith.constant 1.000000e-24 : f32
    %11 = vector.broadcast %cst_6 : f32 to vector<24x1xf32>
    %12 = arith.maximumf %10, %11 : vector<24x1xf32>
    %13 = math.rsqrt %12 : vector<24x1xf32>
    %14 = vector.broadcast %13 : vector<24x1xf32> to vector<24x768xf32>
    %15 = arith.mulf %7, %14 : vector<24x768xf32>
    %c0_7 = arith.constant 0 : index
    %c0_8 = arith.constant 0 : index
    %16 = vector.load %arg4[%c0_7, %c0_8] : memref<24x768xf32, #tpu.memory_space<vmem>>, vector<24x768xf32>
    tpu.vector_store %arg4[%c0_7, %c0_8], %15 {strides = array<i32>} : memref<24x768xf32, #tpu.memory_space<vmem>>, vector<24x768xf32>,
    return
  }
  func.func @transform_0(%arg0: i32) -> (i32, i32) {
    %c0_i32 = arith.constant 0 : i32
    %c0_i32_0 = arith.constant 0 : i32
    return %arg0, %c0_i32 : i32, i32
  }
  func.func @transform_1(%arg0: i32) -> (i32, i32) {
    %c0_i32 = arith.constant 0 : i32
    %c0_i32_0 = arith.constant 0 : i32
    %c0_i32_1 = arith.constant 0 : i32
    return %c0_i32, %c0_i32_0 : i32, i32
  }
  func.func @transform_2(%arg0: i32) -> (i32, i32) {
    %c0_i32 = arith.constant 0 : i32
    %c0_i32_0 = arith.constant 0 : i32
    %c0_i32_1 = arith.constant 0 : i32
    return %c0_i32, %c0_i32_0 : i32, i32
  }
  func.func @transform_3(%arg0: i32) -> (i32, i32) {
    %c0_i32 = arith.constant 0 : i32
    %c0_i32_0 = arith.constant 0 : i32
    return %arg0, %c0_i32 : i32, i32
  }
}

</mosaic_0001>

<llo_original>
// kernel: tpu_custom_call.1
$region0: #{tpu_custom_call.1}
  #allocation0 [shape = 'u32[]', space=smem, size = 0x4, offset = 0x4, fixed_abs, tag = 'smem constant byte address 0x4 - core index']
  #allocation1 [shape = 'u32[144,128]{1,0:T(1,128)}', space=vmem, size = 0x12000, scoped, tag = 'internal scratch']
  %s0 = inlined_call_operand.hbm [shape: f32[48,768], index: 0, kind: input, shape index: {}]
  %s1 = inlined_call_operand.hbm [shape: bf16[768,768], index: 1, kind: input, shape index: {}]
  %s2 = inlined_call_operand.hbm [shape: f32[1,768], index: 2, kind: input, shape index: {}]
  %s3 = inlined_call_operand.hbm [shape: f32[48,768], index: 3, kind: output, shape index: {}]
  %s4 = sld [smem:[#allocation0]]
  $region57: #{tpu_custom_call.1} parent=0
    _
  %s6 = ssub.s32 1, %s4
  %s7 = scalar_select 0, %s6, %s4
  $region1: #{tpu_custom_call.1} parent=0
    #allocation2 [shape = 'u8[147456]{0}', space=vmem, size = 0x24000, scoped, tag = 'input window, operand 0']
    #allocation3 [shape = 's32[2]{0}', space=sflag, size = 0x8, scoped, tag = 'scoped memory for tpu_custom_call.1']
    #allocation4 [shape = 's32[2]{0}', space=sflag, size = 0x8, scoped, tag = 'scoped memory for tpu_custom_call.1']
    #allocation5 [shape = 'u8[1179648]{0}', space=vmem, size = 0x120000, scoped, tag = 'input window, operand 1, single buffered']
    #allocation6 [shape = 's32[1]{0}', space=sflag, size = 0x4, scoped, tag = 'scoped memory for tpu_custom_call.1']
    #allocation7 [shape = 'u8[3072]{0}', space=vmem, size = 0xc00, scoped, tag = 'input window, operand 2, single buffered']
    #allocation8 [shape = 'u8[147456]{0}', space=vmem, size = 0x24000, scoped, tag = 'output window, operand 0']
    %8 = vsyncpa [#allocation3], 0
    %s9 = scalar_lea.sflag [#allocation3], 1
    %10 = vsyncpa %s9, 0
    %11 = vsyncpa [#allocation6], 0
    %12 = vsyncpa [#allocation4], 0
    %s13 = scalar_lea.sflag [#allocation4], 1
    %14 = vsyncpa %s13, 0
    loop: start=0, step=1, limit=4
    $region2: #{tpu_custom_call.1} parent=1 // loop_pre_header
      _
    $region3: #{tpu_custom_call.1} parent=1 // loop_header
      %s16 = sphi 0, %s20
      %p17 = scmp.ge.s32.totalorder %s16, 4
      %s26 = sphi 0, %s28
      %s29 = sphi 0, %s26
      %s30 = sphi 0, %s29
      %s46 = sphi 0, %s30
      %s50 = sphi 0, %s50
      %s52 = sphi 0, %s50
      %s53 = sphi 0, %s52
      %s67 = sphi 0, %s53
      %s71 = sphi 0, %s71
      %s73 = sphi 0, %s71
      %s74 = sphi 0, %s73
      %s88 = sphi 0, %s74
      %s94 = sphi 0, %s96
      %s97 = sphi 0, %s94
      %s98 = sphi 0, %s97
      %s114 = sphi 0, %s98
    $region4: #{tpu_custom_call.1} parent=1 // loop_header_branch
      %19 = sbr.rel (%p17) target = $region8
    $region5: #{tpu_custom_call.1} parent=1 // loop_body
      %s21 = ssub.s32 %s16, 1
      %s22 = ssub.s32 %s16, 2
      %s23 = sadd.s32 %s16, 1
      %s24 = ssub.s32 %s16, %s23
      %p25 = scmp.eq.s32.totalorder %s24, 0
      %s27 = sadd.s32 %s26, 1
      %s28 = scalar_select %p25, %s26, %s27
      %p31 = pneg %p25
      %p32 = scmp.eq.s32.totalorder %s16, 1
      %p33 = por %p31, %p32
      %p34 = scmp.ne.s32.totalorder %s26, %s29
      %p35 = scmp.eq.s32.totalorder %s16, 0
      %p36 = por %p34, %p35
      %p37 = scmp.ne.s32.totalorder %s26, %s29
      %p38 = scmp.eq.s32.totalorder %s21, 1
      %p39 = por %p37, %p38
      %p40 = scmp.ne.s32.totalorder %s29, %s30
      %p41 = scmp.eq.s32.totalorder %s21, 0
      %p42 = por %p40, %p41
      %p43 = scmp.ne.s32.totalorder %s29, %s30
      %p44 = scmp.eq.s32.totalorder %s22, 1
      %p45 = por %p43, %p44
      %p47 = scmp.ne.s32.totalorder %s30, %s46
      %p48 = scmp.eq.s32.totalorder %s22, 0
      %p49 = por %p47, %p48
      %s51 = sadd.s32 %s50, 1
      %p54 = scmp.eq.s32.totalorder %s16, 1
      %p55 = scmp.ne.s32.totalorder %s50, %s52
      %p56 = scmp.eq.s32.totalorder %s16, 0
      %p57 = por %p55, %p56
      %p58 = scmp.ne.s32.totalorder %s50, %s52
      %p59 = scmp.eq.s32.totalorder %s21, 1
      %p60 = por %p58, %p59
      %p61 = scmp.ne.s32.totalorder %s52, %s53
      %p62 = scmp.eq.s32.totalorder %s21, 0
      %p63 = por %p61, %p62
      %p64 = scmp.ne.s32.totalorder %s52, %s53
      %p65 = scmp.eq.s32.totalorder %s22, 1
      %p66 = por %p64, %p65
      %p68 = scmp.ne.s32.totalorder %s53, %s67
      %p69 = scmp.eq.s32.totalorder %s22, 0
      %p70 = por %p68, %p69
      %s72 = sadd.s32 %s71, 1
      %p75 = scmp.eq.s32.totalorder %s16, 1
      %p76 = scmp.ne.s32.totalorder %s71, %s73
      %p77 = scmp.eq.s32.totalorder %s16, 0
      %p78 = por %p76, %p77
      %p79 = scmp.ne.s32.totalorder %s71, %s73
      %p80 = scmp.eq.s32.totalorder %s21, 1
      %p81 = por %p79, %p80
      %p82 = scmp.ne.s32.totalorder %s73, %s74
      %p83 = scmp.eq.s32.totalorder %s21, 0
      %p84 = por %p82, %p83
      %p85 = scmp.ne.s32.totalorder %s73, %s74
      %p86 = scmp.eq.s32.totalorder %s22, 1
      %p87 = por %p85, %p86
      %p89 = scmp.ne.s32.totalorder %s74, %s88
      %p90 = scmp.eq.s32.totalorder %s22, 0
      %p91 = por %p89, %p90
      %s92 = ssub.s32 %s16, %s23
      %p93 = scmp.eq.s32.totalorder %s92, 0
      %s95 = sadd.s32 %s94, 1
      %s96 = scalar_select %p93, %s94, %s95
      %p99 = pneg %p93
      %p100 = scmp.eq.s32.totalorder %s16, 1
      %p101 = por %p99, %p100
      %p102 = scmp.ne.s32.totalorder %s94, %s97
      %p103 = scmp.eq.s32.totalorder %s16, 0
      %p104 = por %p102, %p103
      %p105 = scmp.ne.s32.totalorder %s94, %s97
      %p106 = scmp.eq.s32.totalorder %s21, 1
      %p107 = por %p105, %p106
      %p108 = scmp.ne.s32.totalorder %s97, %s98
      %p109 = scmp.eq.s32.totalorder %s21, 0
      %p110 = por %p108, %p109
      %p111 = scmp.ne.s32.totalorder %s97, %s98
      %p112 = scmp.eq.s32.totalorder %s22, 1
      %p113 = por %p111, %p112
      %p115 = scmp.ne.s32.totalorder %s98, %s114
      %p116 = scmp.eq.s32.totalorder %s22, 0
      %p117 = por %p115, %p116
      %p118 = scmp.le.s32.totalorder 1, %s16
      %p119 = scmp.lt.s32.totalorder %s16, 3
      %p120 = pnand %p118, %p119
      %p121 = pneg %p120
      // Predicated region
      $region9: #{tpu_custom_call.1} parent=5 // pred_check
        _
      $region10: #{tpu_custom_call.1} parent=5 // pred_check_branch
        %123 = sbr.rel (%p120) target = $region12
      $region11: #{tpu_custom_call.1} parent=5 // pred_region
        %s124 = ssub.s32 %s16, 1
        // Predicated region
        $region13: #{tpu_custom_call.1} parent=11 // pred_check
          %p125 = pneg %p63
        $region14: #{tpu_custom_call.1} parent=11 // pred_check_branch
          %127 = sbr.rel (%p125) target = $region16
        $region15: #{tpu_custom_call.1} parent=11 // pred_region
          %s129 = ssub.s32 36864, 36864
          %130 = vsyncadd [#allocation6], %s129
          %s131 = sshll.u32 [#allocation5], 4
          %s132 = int_to_ptr.vmem [resolvable:$true] %s131
          %137 = dma.hbm_to_vmem [thread:$0]  %s1, 36864, %s132, [#allocation6], 384, 384, 24
        $region16: #{tpu_custom_call.1} parent=11 // pred_fallthru
          _
        // Predicated region
        $region17: #{tpu_custom_call.1} parent=11 // pred_check
          %p138 = pneg %p84
        $region18: #{tpu_custom_call.1} parent=11 // pred_check_branch
          %140 = sbr.rel (%p138) target = $region20
        $region19: #{tpu_custom_call.1} parent=11 // pred_region
          %s142 = ssub.s32 96, 96
          %143 = vsyncadd [#allocation6], %s142
          %s145 = sshll.u32 [#allocation7], 4
          %s146 = int_to_ptr.vmem [resolvable:$true] %s145
          %148 = dma.hbm_to_vmem [thread:$0]  %s2, 96, %s146, [#allocation6]
        $region20: #{tpu_custom_call.1} parent=11 // pred_fallthru
          _
      $region12: #{tpu_custom_call.1} parent=5 // pred_fallthru
        _
      %p149 = scmp.lt.s32.totalorder %s16, 2
      // Predicated region
      $region21: #{tpu_custom_call.1} parent=5 // pred_check
        %p150 = pneg %p149
      $region22: #{tpu_custom_call.1} parent=5 // pred_check_branch
        %152 = sbr.rel (%p150) target = $region24
      $region23: #{tpu_custom_call.1} parent=5 // pred_region
        // Predicated region
        $region25: #{tpu_custom_call.1} parent=23 // pred_check
          %p153 = pneg %p36
        $region26: #{tpu_custom_call.1} parent=23 // pred_check_branch
          %155 = sbr.rel (%p153) target = $region28
        $region27: #{tpu_custom_call.1} parent=23 // pred_region
          %s156 = sand.u32 %s26, 1
          %s157 = scalar_lea.sflag [#allocation3], %s156
          %s158 = sand.u32 %s26, 1
          %s159 = smul.addr %s158, 144
          %s160 = scalar_lea.vmem [#allocation2], %s159
          %s161 = smul.u32 3, %s16
          %s163 = ssub.s32 2304, 2304
          %164 = vsyncadd %s157, %s163
          %s165 = smul.addr %s161, 6
          %s166 = smul.addr %s165, 128
          %s167 = scalar_lea.hbm %s0, %s166
          %s168 = sshll.u32 %s160, 4
          %s169 = int_to_ptr.vmem [resolvable:$true] %s168
          %174 = dma.hbm_to_vmem [thread:$0]  %s167, 2304, %s169, %s157, 768, 768, 48
        $region28: #{tpu_custom_call.1} parent=23 // pred_fallthru
          _
      $region24: #{tpu_custom_call.1} parent=5 // pred_fallthru
        _
      %p175 = scmp.le.s32.totalorder 1, %s16
      %p176 = scmp.lt.s32.totalorder %s16, 3
      %p177 = pnand %p175, %p176
      %p178 = pneg %p177
      // Predicated region
      $region29: #{tpu_custom_call.1} parent=5 // pred_check
        _
      $region30: #{tpu_custom_call.1} parent=5 // pred_check_branch
        %180 = sbr.rel (%p177) target = $region32
      $region31: #{tpu_custom_call.1} parent=5 // pred_region
        %s181 = ssub.s32 %s16, 1
        %s182 = sand.u32 %s29, 1
        %s183 = scalar_lea.sflag [#allocation3], %s182
        %s184 = sand.u32 %s29, 1
        %s185 = smul.addr %s184, 144
        %s186 = scalar_lea.vmem [#allocation2], %s185
        // Predicated region
        $region33: #{tpu_custom_call.1} parent=31 // pred_check
          %p187 = pneg %p42
        $region34: #{tpu_custom_call.1} parent=31 // pred_check_branch
          %189 = sbr.rel (%p187) target = $region36
        $region35: #{tpu_custom_call.1} parent=31 // pred_region
          %190 = dma.done %s183, 2304
        $region36: #{tpu_custom_call.1} parent=31 // pred_fallthru
          _
        // Predicated region
        $region37: #{tpu_custom_call.1} parent=31 // pred_check
          %p191 = pneg %p63
        $region38: #{tpu_custom_call.1} parent=31 // pred_check_branch
          %193 = sbr.rel (%p191) target = $region40
        $region39: #{tpu_custom_call.1} parent=31 // pred_region
          %194 = dma.done [#allocation6], 36864
        $region40: #{tpu_custom_call.1} parent=31 // pred_fallthru
          _
        // Predicated region
        $region41: #{tpu_custom_call.1} parent=31 // pred_check
          %p195 = pneg %p84
        $region42: #{tpu_custom_call.1} parent=31 // pred_check_branch
          %197 = sbr.rel (%p195) target = $region44
        $region43: #{tpu_custom_call.1} parent=31 // pred_region
          %198 = dma.done [#allocation6], 96
        $region44: #{tpu_custom_call.1} parent=31 // pred_fallthru
          _
        %s199 = sand.u32 %s29, 1
        %s200 = scalar_lea.sflag [#allocation3], %s199
        %s201 = sand.u32 %s29, 1
        %s202 = smul.addr %s201, 144
        %s203 = scalar_lea.vmem [#allocation2], %s202
        %p204 = pneg %p42
        %p205 = pneg %p39
        %p206 = pneg %p63
        %p207 = pneg %p60
        %p208 = pneg %p84
        %p209 = pneg %p81
        %p210 = pneg %p110
        %p211 = pneg %p107
        %s212 = sand.u32 %s97, 1
        %s213 = scalar_lea.sflag [#allocation4], %s212
        %s214 = sand.u32 %s97, 1
        %s215 = smul.addr %s214, 144
        %s216 = scalar_lea.vmem [#allocation8], %s215
        %s217 = smul.u32 3, %s21
        %s218 = smul.u32 3, %s21
        %v219 = vld [vmem:[%s186] sm:$0xff]
        %v220 = vld [vmem:[%s186 + $0x8] sm:$0xff]
        %v221 = vld [vmem:[%s186 + $0x10] sm:$0xff]
        %v222 = vld [vmem:[%s186 + $0x18] sm:$0xff]
        %v223 = vld [vmem:[%s186 + $0x20] sm:$0xff]
        %v224 = vld [vmem:[%s186 + $0x28] sm:$0xff]
        %v225 = vld [vmem:[%s186 + $0x30] sm:$0xff]
        %v226 = vld [vmem:[%s186 + $0x38] sm:$0xff]
        %v227 = vld [vmem:[%s186 + $0x40] sm:$0xff]
        %v228 = vld [vmem:[%s186 + $0x48] sm:$0xff]
        %v229 = vld [vmem:[%s186 + $0x50] sm:$0xff]
        %v230 = vld [vmem:[%s186 + $0x58] sm:$0xff]
        %v231 = vld [vmem:[%s186 + $0x60] sm:$0xff]
        %v232 = vld [vmem:[%s186 + $0x68] sm:$0xff]
        %v233 = vld [vmem:[%s186 + $0x70] sm:$0xff]
        %v234 = vld [vmem:[%s186 + $0x78] sm:$0xff]
        %v235 = vld [vmem:[%s186 + $0x80] sm:$0xff]
        %v236 = vld [vmem:[%s186 + $0x88] sm:$0xff]
        %v237 = vld [vmem:[#allocation5] sm:$0xff]
        %v238 = vld [vmem:[#allocation5 + $0x8] sm:$0xff]
        %v239 = vld [vmem:[#allocation5 + $0x10] sm:$0xff]
        %v240 = vld [vmem:[#allocation5 + $0x18] sm:$0xff]
        %v241 = vld [vmem:[#allocation5 + $0x20] sm:$0xff]
        %v242 = vld [vmem:[#allocation5 + $0x28] sm:$0xff]
        %v243 = vld [vmem:[#allocation5 + $0x30] sm:$0xff]
        %v244 = vld [vmem:[#allocation5 + $0x38] sm:$0xff]
        %v245 = vld [vmem:[#allocation5 + $0x40] sm:$0xff]
        %v246 = vld [vmem:[#allocation5 + $0x48] sm:$0xff]
        %v247 = vld [vmem:[#allocation5 + $0x50] sm:$0xff]
        %v248 = vld [vmem:[#allocation5 + $0x58] sm:$0xff]
        %v249 = vld [vmem:[#allocation5 + $0x60] sm:$0xff]
        %v250 = vld [vmem:[#allocation5 + $0x68] sm:$0xff]
        %v251 = vld [vmem:[#allocation5 + $0x70] sm:$0xff]
        %v252 = vld [vmem:[#allocation5 + $0x78] sm:$0xff]
        %v253 = vld [vmem:[#allocation5 + $0x80] sm:$0xff]
        %v254 = vld [vmem:[#allocation5 + $0x88] sm:$0xff]
        %v255 = vld [vmem:[#allocation5 + $0x90] sm:$0xff]
        %v256 = vld [vmem:[#allocation5 + $0x98] sm:$0xff]
        %v257 = vld [vmem:[#allocation5 + $0xa0] sm:$0xff]
        %v258 = vld [vmem:[#allocation5 + $0xa8] sm:$0xff]
        %v259 = vld [vmem:[#allocation5 + $0xb0] sm:$0xff]
        %v260 = vld [vmem:[#allocation5 + $0xb8] sm:$0xff]
        %v261 = vld [vmem:[#allocation5 + $0xc0] sm:$0xff]
        %v262 = vld [vmem:[#allocation5 + $0xc8] sm:$0xff]
        %v263 = vld [vmem:[#allocation5 + $0xd0] sm:$0xff]
        %v264 = vld [vmem:[#allocation5 + $0xd8] sm:$0xff]
        %v265 = vld [vmem:[#allocation5 + $0xe0] sm:$0xff]
        %v266 = vld [vmem:[#allocation5 + $0xe8] sm:$0xff]
        %v267 = vld [vmem:[#allocation5 + $0xf0] sm:$0xff]
        %v268 = vld [vmem:[#allocation5 + $0xf8] sm:$0xff]
        %v269 = vld [vmem:[#allocation5 + $0x100] sm:$0xff]
        %v270 = vld [vmem:[#allocation5 + $0x108] sm:$0xff]
        %v271 = vld [vmem:[#allocation5 + $0x110] sm:$0xff]
        %v272 = vld [vmem:[#allocation5 + $0x118] sm:$0xff]
        %v273 = vld [vmem:[#allocation5 + $0x120] sm:$0xff]
        %v274 = vld [vmem:[#allocation5 + $0x128] sm:$0xff]
        %v275 = vld [vmem:[#allocation5 + $0x130] sm:$0xff]
        %v276 = vld [vmem:[#allocation5 + $0x138] sm:$0xff]
        %v277 = vld [vmem:[#allocation5 + $0x140] sm:$0xff]
        %v278 = vld [vmem:[#allocation5 + $0x148] sm:$0xff]
        %v279 = vld [vmem:[#allocation5 + $0x150] sm:$0xff]
        %v280 = vld [vmem:[#allocation5 + $0x158] sm:$0xff]
        %v281 = vld [vmem:[#allocation5 + $0x160] sm:$0xff]
        %v282 = vld [vmem:[#allocation5 + $0x168] sm:$0xff]
        %v283 = vld [vmem:[#allocation5 + $0x170] sm:$0xff]
        %v284 = vld [vmem:[#allocation5 + $0x178] sm:$0xff]
        %v285 = vld [vmem:[#allocation5 + $0x180] sm:$0xff]
        %v286 = vld [vmem:[#allocation5 + $0x188] sm:$0xff]
        %v287 = vld [vmem:[#allocation5 + $0x190] sm:$0xff]
        %v288 = vld [vmem:[#allocation5 + $0x198] sm:$0xff]
        %v289 = vld [vmem:[#allocation5 + $0x1a0] sm:$0xff]
        %v290 = vld [vmem:[#allocation5 + $0x1a8] sm:$0xff]
        %v291 = vld [vmem:[#allocation5 + $0x1b0] sm:$0xff]
        %v292 = vld [vmem:[#allocation5 + $0x1b8] sm:$0xff]
        %v293 = vld [vmem:[#allocation5 + $0x1c0] sm:$0xff]
        %v294 = vld [vmem:[#allocation5 + $0x1c8] sm:$0xff]
        %v295 = vld [vmem:[#allocation5 + $0x1d0] sm:$0xff]
        %v296 = vld [vmem:[#allocation5 + $0x1d8] sm:$0xff]
        %v297 = vld [vmem:[#allocation5 + $0x1e0] sm:$0xff]
        %v298 = vld [vmem:[#allocation5 + $0x1e8] sm:$0xff]
        %v299 = vld [vmem:[#allocation5 + $0x1f0] sm:$0xff]
        %v300 = vld [vmem:[#allocation5 + $0x1f8] sm:$0xff]
        %v301 = vld [vmem:[#allocation5 + $0x200] sm:$0xff]
        %v302 = vld [vmem:[#allocation5 + $0x208] sm:$0xff]
        %v303 = vld [vmem:[#allocation5 + $0x210] sm:$0xff]
        %v304 = vld [vmem:[#allocation5 + $0x218] sm:$0xff]
        %v305 = vld [vmem:[#allocation5 + $0x220] sm:$0xff]
        %v306 = vld [vmem:[#allocation5 + $0x228] sm:$0xff]
        %v307 = vld [vmem:[#allocation5 + $0x230] sm:$0xff]
        %v308 = vld [vmem:[#allocation5 + $0x238] sm:$0xff]
        %v309 = vld [vmem:[#allocation5 + $0x240] sm:$0xff]
        %v310 = vld [vmem:[#allocation5 + $0x248] sm:$0xff]
        %v311 = vld [vmem:[#allocation5 + $0x250] sm:$0xff]
        %v312 = vld [vmem:[#allocation5 + $0x258] sm:$0xff]
        %v313 = vld [vmem:[#allocation5 + $0x260] sm:$0xff]
        %v314 = vld [vmem:[#allocation5 + $0x268] sm:$0xff]
        %v315 = vld [vmem:[#allocation5 + $0x270] sm:$0xff]
        %v316 = vld [vmem:[#allocation5 + $0x278] sm:$0xff]
        %v317 = vld [vmem:[#allocation5 + $0x280] sm:$0xff]
        %v318 = vld [vmem:[#allocation5 + $0x288] sm:$0xff]
        %v319 = vld [vmem:[#allocation5 + $0x290] sm:$0xff]
        %v320 = vld [vmem:[#allocation5 + $0x298] sm:$0xff]
        %v321 = vld [vmem:[#allocation5 + $0x2a0] sm:$0xff]
        %v322 = vld [vmem:[#allocation5 + $0x2a8] sm:$0xff]
        %v323 = vld [vmem:[#allocation5 + $0x2b0] sm:$0xff]
        %v324 = vld [vmem:[#allocation5 + $0x2b8] sm:$0xff]
        %v325 = vld [vmem:[#allocation5 + $0x2c0] sm:$0xff]
        %v326 = vld [vmem:[#allocation5 + $0x2c8] sm:$0xff]
        %v327 = vld [vmem:[#allocation5 + $0x2d0] sm:$0xff]
        %v328 = vld [vmem:[#allocation5 + $0x2d8] sm:$0xff]
        %v329 = vld [vmem:[#allocation5 + $0x2e0] sm:$0xff]
        %v330 = vld [vmem:[#allocation5 + $0x2e8] sm:$0xff]
        %v331 = vld [vmem:[#allocation5 + $0x2f0] sm:$0xff]
        %v332 = vld [vmem:[#allocation5 + $0x2f8] sm:$0xff]
        %v333 = vld [vmem:[#allocation5 + $0x300] sm:$0xff]
        %v334 = vld [vmem:[#allocation5 + $0x308] sm:$0xff]
        %v335 = vld [vmem:[#allocation5 + $0x310] sm:$0xff]
        %v336 = vld [vmem:[#allocation5 + $0x318] sm:$0xff]
        %v337 = vld [vmem:[#allocation5 + $0x320] sm:$0xff]
        %v338 = vld [vmem:[#allocation5 + $0x328] sm:$0xff]
        %v339 = vld [vmem:[#allocation5 + $0x330] sm:$0xff]
        %v340 = vld [vmem:[#allocation5 + $0x338] sm:$0xff]
        %v341 = vld [vmem:[#allocation5 + $0x340] sm:$0xff]
        %v342 = vld [vmem:[#allocation5 + $0x348] sm:$0xff]
        %v343 = vld [vmem:[#allocation5 + $0x350] sm:$0xff]
        %v344 = vld [vmem:[#allocation5 + $0x358] sm:$0xff]
        %v345 = vld [vmem:[#allocation5 + $0x360] sm:$0xff]
        %v346 = vld [vmem:[#allocation5 + $0x368] sm:$0xff]
        %v347 = vld [vmem:[#allocation5 + $0x370] sm:$0xff]
        %v348 = vld [vmem:[#allocation5 + $0x378] sm:$0xff]
        %v349 = vld [vmem:[#allocation5 + $0x380] sm:$0xff]
        %v350 = vld [vmem:[#allocation5 + $0x388] sm:$0xff]
        %v351 = vld [vmem:[#allocation5 + $0x390] sm:$0xff]
        %v352 = vld [vmem:[#allocation5 + $0x398] sm:$0xff]
        %v353 = vld [vmem:[#allocation5 + $0x3a0] sm:$0xff]
        %v354 = vld [vmem:[#allocation5 + $0x3a8] sm:$0xff]
        %v355 = vld [vmem:[#allocation5 + $0x3b0] sm:$0xff]
        %v356 = vld [vmem:[#allocation5 + $0x3b8] sm:$0xff]
        %v357 = vld [vmem:[#allocation5 + $0x3c0] sm:$0xff]
        %v358 = vld [vmem:[#allocation5 + $0x3c8] sm:$0xff]
        %v359 = vld [vmem:[#allocation5 + $0x3d0] sm:$0xff]
        %v360 = vld [vmem:[#allocation5 + $0x3d8] sm:$0xff]
        %v361 = vld [vmem:[#allocation5 + $0x3e0] sm:$0xff]
        %v362 = vld [vmem:[#allocation5 + $0x3e8] sm:$0xff]
        %v363 = vld [vmem:[#allocation5 + $0x3f0] sm:$0xff]
        %v364 = vld [vmem:[#allocation5 + $0x3f8] sm:$0xff]
        %v365 = vld [vmem:[#allocation5 + $0x400] sm:$0xff]
        %v366 = vld [vmem:[#allocation5 + $0x408] sm:$0xff]
        %v367 = vld [vmem:[#allocation5 + $0x410] sm:$0xff]
        %v368 = vld [vmem:[#allocation5 + $0x418] sm:$0xff]
        %v369 = vld [vmem:[#allocation5 + $0x420] sm:$0xff]
        %v370 = vld [vmem:[#allocation5 + $0x428] sm:$0xff]
        %v371 = vld [vmem:[#allocation5 + $0x430] sm:$0xff]
        %v372 = vld [vmem:[#allocation5 + $0x438] sm:$0xff]
        %v373 = vld [vmem:[#allocation5 + $0x440] sm:$0xff]
        %v374 = vld [vmem:[#allocation5 + $0x448] sm:$0xff]
        %v375 = vld [vmem:[#allocation5 + $0x450] sm:$0xff]
        %v376 = vld [vmem:[#allocation5 + $0x458] sm:$0xff]
        %v377 = vld [vmem:[#allocation5 + $0x460] sm:$0xff]
        %v378 = vld [vmem:[#allocation5 + $0x468] sm:$0xff]
        %v379 = vld [vmem:[#allocation5 + $0x470] sm:$0xff]
        %v380 = vld [vmem:[#allocation5 + $0x478] sm:$0xff]
        %v381 = vld [vmem:[#allocation5 + $0x480] sm:$0xff]
        %v382 = vld [vmem:[#allocation5 + $0x488] sm:$0xff]
        %v383 = vld [vmem:[#allocation5 + $0x490] sm:$0xff]
        %v384 = vld [vmem:[#allocation5 + $0x498] sm:$0xff]
        %v385 = vld [vmem:[#allocation5 + $0x4a0] sm:$0xff]
        %v386 = vld [vmem:[#allocation5 + $0x4a8] sm:$0xff]
        %v387 = vld [vmem:[#allocation5 + $0x4b0] sm:$0xff]
        %v388 = vld [vmem:[#allocation5 + $0x4b8] sm:$0xff]
        %v389 = vld [vmem:[#allocation5 + $0x4c0] sm:$0xff]
        %v390 = vld [vmem:[#allocation5 + $0x4c8] sm:$0xff]
        %v391 = vld [vmem:[#allocation5 + $0x4d0] sm:$0xff]
        %v392 = vld [vmem:[#allocation5 + $0x4d8] sm:$0xff]
        %v393 = vld [vmem:[#allocation5 + $0x4e0] sm:$0xff]
        %v394 = vld [vmem:[#allocation5 + $0x4e8] sm:$0xff]
        %v395 = vld [vmem:[#allocation5 + $0x4f0] sm:$0xff]
        %v396 = vld [vmem:[#allocation5 + $0x4f8] sm:$0xff]
        %v397 = vld [vmem:[#allocation5 + $0x500] sm:$0xff]
        %v398 = vld [vmem:[#allocation5 + $0x508] sm:$0xff]
        %v399 = vld [vmem:[#allocation5 + $0x510] sm:$0xff]
        %v400 = vld [vmem:[#allocation5 + $0x518] sm:$0xff]
        %v401 = vld [vmem:[#allocation5 + $0x520] sm:$0xff]
        %v402 = vld [vmem:[#allocation5 + $0x528] sm:$0xff]
        %v403 = vld [vmem:[#allocation5 + $0x530] sm:$0xff]
        %v404 = vld [vmem:[#allocation5 + $0x538] sm:$0xff]
        %v405 = vld [vmem:[#allocation5 + $0x540] sm:$0xff]
        %v406 = vld [vmem:[#allocation5 + $0x548] sm:$0xff]
        %v407 = vld [vmem:[#allocation5 + $0x550] sm:$0xff]
        %v408 = vld [vmem:[#allocation5 + $0x558] sm:$0xff]
        %v409 = vld [vmem:[#allocation5 + $0x560] sm:$0xff]
        %v410 = vld [vmem:[#allocation5 + $0x568] sm:$0xff]
        %v411 = vld [vmem:[#allocation5 + $0x570] sm:$0xff]
        %v412 = vld [vmem:[#allocation5 + $0x578] sm:$0xff]
        %v413 = vld [vmem:[#allocation5 + $0x580] sm:$0xff]
        %v414 = vld [vmem:[#allocation5 + $0x588] sm:$0xff]
        %v415 = vld [vmem:[#allocation5 + $0x590] sm:$0xff]
        %v416 = vld [vmem:[#allocation5 + $0x598] sm:$0xff]
        %v417 = vld [vmem:[#allocation5 + $0x5a0] sm:$0xff]
        %v418 = vld [vmem:[#allocation5 + $0x5a8] sm:$0xff]
        %v419 = vld [vmem:[#allocation5 + $0x5b0] sm:$0xff]
        %v420 = vld [vmem:[#allocation5 + $0x5b8] sm:$0xff]
        %v421 = vld [vmem:[#allocation5 + $0x5c0] sm:$0xff]
        %v422 = vld [vmem:[#allocation5 + $0x5c8] sm:$0xff]
        %v423 = vld [vmem:[#allocation5 + $0x5d0] sm:$0xff]
        %v424 = vld [vmem:[#allocation5 + $0x5d8] sm:$0xff]
        %v425 = vld [vmem:[#allocation5 + $0x5e0] sm:$0xff]
        %v426 = vld [vmem:[#allocation5 + $0x5e8] sm:$0xff]
        %v427 = vld [vmem:[#allocation5 + $0x5f0] sm:$0xff]
        %v428 = vld [vmem:[#allocation5 + $0x5f8] sm:$0xff]
        %v429 = vld [vmem:[#allocation5 + $0x600] sm:$0xff]
        %v430 = vld [vmem:[#allocation5 + $0x608] sm:$0xff]
        %v431 = vld [vmem:[#allocation5 + $0x610] sm:$0xff]
        %v432 = vld [vmem:[#allocation5 + $0x618] sm:$0xff]
        %v433 = vld [vmem:[#allocation5 + $0x620] sm:$0xff]
        %v434 = vld [vmem:[#allocation5 + $0x628] sm:$0xff]
        %v435 = vld [vmem:[#allocation5 + $0x630] sm:$0xff]
        %v436 = vld [vmem:[#allocation5 + $0x638] sm:$0xff]
        %v437 = vld [vmem:[#allocation5 + $0x640] sm:$0xff]
        %v438 = vld [vmem:[#allocation5 + $0x648] sm:$0xff]
        %v439 = vld [vmem:[#allocation5 + $0x650] sm:$0xff]
        %v440 = vld [vmem:[#allocation5 + $0x658] sm:$0xff]
        %v441 = vld [vmem:[#allocation5 + $0x660] sm:$0xff]
        %v442 = vld [vmem:[#allocation5 + $0x668] sm:$0xff]
        %v443 = vld [vmem:[#allocation5 + $0x670] sm:$0xff]
        %v444 = vld [vmem:[#allocation5 + $0x678] sm:$0xff]
        %v445 = vld [vmem:[#allocation5 + $0x680] sm:$0xff]
        %v446 = vld [vmem:[#allocation5 + $0x688] sm:$0xff]
        %v447 = vld [vmem:[#allocation5 + $0x690] sm:$0xff]
        %v448 = vld [vmem:[#allocation5 + $0x698] sm:$0xff]
        %v449 = vld [vmem:[#allocation5 + $0x6a0] sm:$0xff]
        %v450 = vld [vmem:[#allocation5 + $0x6a8] sm:$0xff]
        %v451 = vld [vmem:[#allocation5 + $0x6b0] sm:$0xff]
        %v452 = vld [vmem:[#allocation5 + $0x6b8] sm:$0xff]
        %v453 = vld [vmem:[#allocation5 + $0x6c0] sm:$0xff]
        %v454 = vld [vmem:[#allocation5 + $0x6c8] sm:$0xff]
        %v455 = vld [vmem:[#allocation5 + $0x6d0] sm:$0xff]
        %v456 = vld [vmem:[#allocation5 + $0x6d8] sm:$0xff]
        %v457 = vld [vmem:[#allocation5 + $0x6e0] sm:$0xff]
        %v458 = vld [vmem:[#allocation5 + $0x6e8] sm:$0xff]
        %v459 = vld [vmem:[#allocation5 + $0x6f0] sm:$0xff]
        %v460 = vld [vmem:[#allocation5 + $0x6f8] sm:$0xff]
        %v461 = vld [vmem:[#allocation5 + $0x700] sm:$0xff]
        %v462 = vld [vmem:[#allocation5 + $0x708] sm:$0xff]
        %v463 = vld [vmem:[#allocation5 + $0x710] sm:$0xff]
        %v464 = vld [vmem:[#allocation5 + $0x718] sm:$0xff]
        %v465 = vld [vmem:[#allocation5 + $0x720] sm:$0xff]
        %v466 = vld [vmem:[#allocation5 + $0x728] sm:$0xff]
        %v467 = vld [vmem:[#allocation5 + $0x730] sm:$0xff]
        %v468 = vld [vmem:[#allocation5 + $0x738] sm:$0xff]
        %v469 = vld [vmem:[#allocation5 + $0x740] sm:$0xff]
        %v470 = vld [vmem:[#allocation5 + $0x748] sm:$0xff]
        %v471 = vld [vmem:[#allocation5 + $0x750] sm:$0xff]
        %v472 = vld [vmem:[#allocation5 + $0x758] sm:$0xff]
        %v473 = vld [vmem:[#allocation5 + $0x760] sm:$0xff]
        %v474 = vld [vmem:[#allocation5 + $0x768] sm:$0xff]
        %v475 = vld [vmem:[#allocation5 + $0x770] sm:$0xff]
        %v476 = vld [vmem:[#allocation5 + $0x778] sm:$0xff]
        %v477 = vld [vmem:[#allocation5 + $0x780] sm:$0xff]
        %v478 = vld [vmem:[#allocation5 + $0x788] sm:$0xff]
        %v479 = vld [vmem:[#allocation5 + $0x790] sm:$0xff]
        %v480 = vld [vmem:[#allocation5 + $0x798] sm:$0xff]
        %v481 = vld [vmem:[#allocation5 + $0x7a0] sm:$0xff]
        %v482 = vld [vmem:[#allocation5 + $0x7a8] sm:$0xff]
        %v483 = vld [vmem:[#allocation5 + $0x7b0] sm:$0xff]
        %v484 = vld [vmem:[#allocation5 + $0x7b8] sm:$0xff]
        %v485 = vld [vmem:[#allocation5 + $0x7c0] sm:$0xff]
        %v486 = vld [vmem:[#allocation5 + $0x7c8] sm:$0xff]
        %v487 = vld [vmem:[#allocation5 + $0x7d0] sm:$0xff]
        %v488 = vld [vmem:[#allocation5 + $0x7d8] sm:$0xff]
        %v489 = vld [vmem:[#allocation5 + $0x7e0] sm:$0xff]
        %v490 = vld [vmem:[#allocation5 + $0x7e8] sm:$0xff]
        %v491 = vld [vmem:[#allocation5 + $0x7f0] sm:$0xff]
        %v492 = vld [vmem:[#allocation5 + $0x7f8] sm:$0xff]
        %v493 = vld [vmem:[#allocation5 + $0x800] sm:$0xff]
        %v494 = vld [vmem:[#allocation5 + $0x808] sm:$0xff]
        %v495 = vld [vmem:[#allocation5 + $0x810] sm:$0xff]
        %v496 = vld [vmem:[#allocation5 + $0x818] sm:$0xff]
        %v497 = vld [vmem:[#allocation5 + $0x820] sm:$0xff]
        %v498 = vld [vmem:[#allocation5 + $0x828] sm:$0xff]
        %v499 = vld [vmem:[#allocation5 + $0x830] sm:$0xff]
        %v500 = vld [vmem:[#allocation5 + $0x838] sm:$0xff]
        %v501 = vld [vmem:[#allocation5 + $0x840] sm:$0xff]
        %v502 = vld [vmem:[#allocation5 + $0x848] sm:$0xff]
        %v503 = vld [vmem:[#allocation5 + $0x850] sm:$0xff]
        %v504 = vld [vmem:[#allocation5 + $0x858] sm:$0xff]
        %v505 = vld [vmem:[#allocation5 + $0x860] sm:$0xff]
        %v506 = vld [vmem:[#allocation5 + $0x868] sm:$0xff]
        %v507 = vld [vmem:[#allocation5 + $0x870] sm:$0xff]
        %v508 = vld [vmem:[#allocation5 + $0x878] sm:$0xff]
        %v509 = vld [vmem:[#allocation5 + $0x880] sm:$0xff]
        %v510 = vld [vmem:[#allocation5 + $0x888] sm:$0xff]
        %v511 = vld [vmem:[#allocation5 + $0x890] sm:$0xff]
        %v512 = vld [vmem:[#allocation5 + $0x898] sm:$0xff]
        %v513 = vld [vmem:[#allocation5 + $0x8a0] sm:$0xff]
        %v514 = vld [vmem:[#allocation5 + $0x8a8] sm:$0xff]
        %v515 = vld [vmem:[#allocation5 + $0x8b0] sm:$0xff]
        %v516 = vld [vmem:[#allocation5 + $0x8b8] sm:$0xff]
        %v517 = vld [vmem:[#allocation5 + $0x8c0] sm:$0xff]
        %v518 = vld [vmem:[#allocation5 + $0x8c8] sm:$0xff]
        %v519 = vld [vmem:[#allocation5 + $0x8d0] sm:$0xff]
        %v520 = vld [vmem:[#allocation5 + $0x8d8] sm:$0xff]
        %v521 = vld [vmem:[#allocation5 + $0x8e0] sm:$0xff]
        %v522 = vld [vmem:[#allocation5 + $0x8e8] sm:$0xff]
        %v523 = vld [vmem:[#allocation5 + $0x8f0] sm:$0xff]
        %v524 = vld [vmem:[#allocation5 + $0x8f8] sm:$0xff]
        %v525 = vld [vmem:[#allocation7] sm:$0x3f]
        %v526 = vpack.c.bf16 %v225, %v219
        %v527 = vpack.c.bf16 %v226, %v220
        %v528 = vpack.c.bf16 %v227, %v221
        %v529 = vpack.c.bf16 %v228, %v222
        %v530 = vpack.c.bf16 %v229, %v223
        %v531 = vpack.c.bf16 %v230, %v224
        %v532 = vpack.c.bf16 %v231, %v231
        %v533 = vpack.c.bf16 %v232, %v232
        %v534 = vpack.c.bf16 %v233, %v233
        %v535 = vpack.c.bf16 %v234, %v234
        %v536 = vpack.c.bf16 %v235, %v235
        %v537 = vpack.c.bf16 %v236, %v236
        %v539 = vlaneseq
        %v540 = vshrl.u32 %v539, 7
        %v541 = vsub.s32 0, %v540
        %v542 = vrot.slane %v525, %v541
        %v543 = vlaneseq
        %v544 = vshrl.u32 %v543, 7
        %v545 = vsub.s32 1, %v544
        %v546 = vrot.slane %v525, %v545
        %v547 = vlaneseq
        %v548 = vshrl.u32 %v547, 7
        %v549 = vsub.s32 2, %v548
        %v550 = vrot.slane %v525, %v549
        %v551 = vlaneseq
        %v552 = vshrl.u32 %v551, 7
        %v553 = vsub.s32 3, %v552
        %v554 = vrot.slane %v525, %v553
        %v555 = vlaneseq
        %v556 = vshrl.u32 %v555, 7
        %v557 = vsub.s32 4, %v556
        %v558 = vrot.slane %v525, %v557
        %v559 = vlaneseq
        %v560 = vshrl.u32 %v559, 7
        %v561 = vsub.s32 5, %v560
        %v562 = vrot.slane %v525, %v561
        %v857 = vunpack.c.l.b16 %v237
        %v858 = vunpack.c.h.b16 %v237
        %v859 = vunpack.c.l.b16 %v238
        %v860 = vunpack.c.h.b16 %v238
        %v861 = vunpack.c.l.b16 %v239
        %v862 = vunpack.c.h.b16 %v239
        %v863 = vunpack.c.l.b16 %v240
        %v864 = vunpack.c.h.b16 %v240
        %v865 = vunpack.c.l.b16 %v241
        %v866 = vunpack.c.h.b16 %v241
        %v867 = vunpack.c.l.b16 %v242
        %v868 = vunpack.c.h.b16 %v242
        %v869 = vunpack.c.l.b16 %v243
        %v870 = vunpack.c.h.b16 %v243
        %v871 = vunpack.c.l.b16 %v244
        %v872 = vunpack.c.h.b16 %v244
        %v873 = vunpack.c.l.b16 %v245
        %v874 = vunpack.c.h.b16 %v245
        %v875 = vunpack.c.l.b16 %v246
        %v876 = vunpack.c.h.b16 %v246
        %v877 = vunpack.c.l.b16 %v247
        %v878 = vunpack.c.h.b16 %v247
        %v879 = vunpack.c.l.b16 %v248
        %v880 = vunpack.c.h.b16 %v248
        %v881 = vunpack.c.l.b16 %v249
        %v882 = vunpack.c.h.b16 %v249
        %v883 = vunpack.c.l.b16 %v250
        %v884 = vunpack.c.h.b16 %v250
        %v885 = vunpack.c.l.b16 %v251
        %v886 = vunpack.c.h.b16 %v251
        %v887 = vunpack.c.l.b16 %v252
        %v888 = vunpack.c.h.b16 %v252
        %v889 = vunpack.c.l.b16 %v253
        %v890 = vunpack.c.h.b16 %v253
        %v891 = vunpack.c.l.b16 %v254
        %v892 = vunpack.c.h.b16 %v254
        %v893 = vunpack.c.l.b16 %v255
        %v894 = vunpack.c.h.b16 %v255
        %v895 = vunpack.c.l.b16 %v256
        %v896 = vunpack.c.h.b16 %v256
        %v897 = vunpack.c.l.b16 %v257
        %v898 = vunpack.c.h.b16 %v257
        %v899 = vunpack.c.l.b16 %v258
        %v900 = vunpack.c.h.b16 %v258
        %v901 = vunpack.c.l.b16 %v259
        %v902 = vunpack.c.h.b16 %v259
        %v903 = vunpack.c.l.b16 %v260
        %v904 = vunpack.c.h.b16 %v260
        %v905 = vunpack.c.l.b16 %v261
        %v906 = vunpack.c.h.b16 %v261
        %v907 = vunpack.c.l.b16 %v262
        %v908 = vunpack.c.h.b16 %v262
        %v909 = vunpack.c.l.b16 %v263
        %v910 = vunpack.c.h.b16 %v263
        %v911 = vunpack.c.l.b16 %v264
        %v912 = vunpack.c.h.b16 %v264
        %v913 = vunpack.c.l.b16 %v265
        %v914 = vunpack.c.h.b16 %v265
        %v915 = vunpack.c.l.b16 %v266
        %v916 = vunpack.c.h.b16 %v266
        %v917 = vunpack.c.l.b16 %v267
        %v918 = vunpack.c.h.b16 %v267
        %v919 = vunpack.c.l.b16 %v268
        %v920 = vunpack.c.h.b16 %v268
        %v921 = vunpack.c.l.b16 %v269
        %v922 = vunpack.c.h.b16 %v269
        %v923 = vunpack.c.l.b16 %v270
        %v924 = vunpack.c.h.b16 %v270
        %v925 = vunpack.c.l.b16 %v271
        %v926 = vunpack.c.h.b16 %v271
        %v927 = vunpack.c.l.b16 %v272
        %v928 = vunpack.c.h.b16 %v272
        %v929 = vunpack.c.l.b16 %v273
        %v930 = vunpack.c.h.b16 %v273
        %v931 = vunpack.c.l.b16 %v274
        %v932 = vunpack.c.h.b16 %v274
        %v933 = vunpack.c.l.b16 %v275
        %v934 = vunpack.c.h.b16 %v275
        %v935 = vunpack.c.l.b16 %v276
        %v936 = vunpack.c.h.b16 %v276
        %v937 = vunpack.c.l.b16 %v277
        %v938 = vunpack.c.h.b16 %v277
        %v939 = vunpack.c.l.b16 %v278
        %v940 = vunpack.c.h.b16 %v278
        %v941 = vunpack.c.l.b16 %v279
        %v942 = vunpack.c.h.b16 %v279
        %v943 = vunpack.c.l.b16 %v280
        %v944 = vunpack.c.h.b16 %v280
        %v945 = vunpack.c.l.b16 %v281
        %v946 = vunpack.c.h.b16 %v281
        %v947 = vunpack.c.l.b16 %v282
        %v948 = vunpack.c.h.b16 %v282
        %v949 = vunpack.c.l.b16 %v283
        %v950 = vunpack.c.h.b16 %v283
        %v951 = vunpack.c.l.b16 %v284
        %v952 = vunpack.c.h.b16 %v284
        %v953 = vunpack.c.l.b16 %v285
        %v954 = vunpack.c.h.b16 %v285
        %v955 = vunpack.c.l.b16 %v286
        %v956 = vunpack.c.h.b16 %v286
        %v957 = vunpack.c.l.b16 %v287
        %v958 = vunpack.c.h.b16 %v287
        %v959 = vunpack.c.l.b16 %v288
        %v960 = vunpack.c.h.b16 %v288
        %v961 = vunpack.c.l.b16 %v289
        %v962 = vunpack.c.h.b16 %v289
        %v963 = vunpack.c.l.b16 %v290
        %v964 = vunpack.c.h.b16 %v290
        %v965 = vunpack.c.l.b16 %v291
        %v966 = vunpack.c.h.b16 %v291
        %v967 = vunpack.c.l.b16 %v292
        %v968 = vunpack.c.h.b16 %v292
        %v969 = vunpack.c.l.b16 %v293
        %v970 = vunpack.c.h.b16 %v293
        %v971 = vunpack.c.l.b16 %v294
        %v972 = vunpack.c.h.b16 %v294
        %v973 = vunpack.c.l.b16 %v295
        %v974 = vunpack.c.h.b16 %v295
        %v975 = vunpack.c.l.b16 %v296
        %v976 = vunpack.c.h.b16 %v296
        %v977 = vunpack.c.l.b16 %v297
        %v978 = vunpack.c.h.b16 %v297
        %v979 = vunpack.c.l.b16 %v298
        %v980 = vunpack.c.h.b16 %v298
        %v981 = vunpack.c.l.b16 %v299
        %v982 = vunpack.c.h.b16 %v299
        %v983 = vunpack.c.l.b16 %v300
        %v984 = vunpack.c.h.b16 %v300
        %v985 = vunpack.c.l.b16 %v301
        %v986 = vunpack.c.h.b16 %v301
        %v987 = vunpack.c.l.b16 %v302
        %v988 = vunpack.c.h.b16 %v302
        %v989 = vunpack.c.l.b16 %v303
        %v990 = vunpack.c.h.b16 %v303
        %v991 = vunpack.c.l.b16 %v304
        %v992 = vunpack.c.h.b16 %v304
        %v993 = vunpack.c.l.b16 %v305
        %v994 = vunpack.c.h.b16 %v305
        %v995 = vunpack.c.l.b16 %v306
        %v996 = vunpack.c.h.b16 %v306
        %v997 = vunpack.c.l.b16 %v307
        %v998 = vunpack.c.h.b16 %v307
        %v999 = vunpack.c.l.b16 %v308
        %v1000 = vunpack.c.h.b16 %v308
        %v1001 = vunpack.c.l.b16 %v309
        %v1002 = vunpack.c.h.b16 %v309
        %v1003 = vunpack.c.l.b16 %v310
        %v1004 = vunpack.c.h.b16 %v310
        %v1005 = vunpack.c.l.b16 %v311
        %v1006 = vunpack.c.h.b16 %v311
        %v1007 = vunpack.c.l.b16 %v312
        %v1008 = vunpack.c.h.b16 %v312
        %v1009 = vunpack.c.l.b16 %v313
        %v1010 = vunpack.c.h.b16 %v313
        %v1011 = vunpack.c.l.b16 %v314
        %v1012 = vunpack.c.h.b16 %v314
        %v1013 = vunpack.c.l.b16 %v315
        %v1014 = vunpack.c.h.b16 %v315
        %v1015 = vunpack.c.l.b16 %v316
        %v1016 = vunpack.c.h.b16 %v316
        %v1017 = vunpack.c.l.b16 %v317
        %v1018 = vunpack.c.h.b16 %v317
        %v1019 = vunpack.c.l.b16 %v318
        %v1020 = vunpack.c.h.b16 %v318
        %v1021 = vunpack.c.l.b16 %v319
        %v1022 = vunpack.c.h.b16 %v319
        %v1023 = vunpack.c.l.b16 %v320
        %v1024 = vunpack.c.h.b16 %v320
        %v1025 = vunpack.c.l.b16 %v321
        %v1026 = vunpack.c.h.b16 %v321
        %v1027 = vunpack.c.l.b16 %v322
        %v1028 = vunpack.c.h.b16 %v322
        %v1029 = vunpack.c.l.b16 %v323
        %v1030 = vunpack.c.h.b16 %v323
        %v1031 = vunpack.c.l.b16 %v324
        %v1032 = vunpack.c.h.b16 %v324
        %v1033 = vunpack.c.l.b16 %v325
        %v1034 = vunpack.c.h.b16 %v325
        %v1035 = vunpack.c.l.b16 %v326
        %v1036 = vunpack.c.h.b16 %v326
        %v1037 = vunpack.c.l.b16 %v327
        %v1038 = vunpack.c.h.b16 %v327
        %v1039 = vunpack.c.l.b16 %v328
        %v1040 = vunpack.c.h.b16 %v328
        %v1041 = vunpack.c.l.b16 %v329
        %v1042 = vunpack.c.h.b16 %v329
        %v1043 = vunpack.c.l.b16 %v330
        %v1044 = vunpack.c.h.b16 %v330
        %v1045 = vunpack.c.l.b16 %v331
        %v1046 = vunpack.c.h.b16 %v331
        %v1047 = vunpack.c.l.b16 %v332
        %v1048 = vunpack.c.h.b16 %v332
        %v1049 = vunpack.c.l.b16 %v333
        %v1050 = vunpack.c.h.b16 %v333
        %v1051 = vunpack.c.l.b16 %v334
        %v1052 = vunpack.c.h.b16 %v334
        %v1053 = vunpack.c.l.b16 %v335
        %v1054 = vunpack.c.h.b16 %v335
        %v1055 = vunpack.c.l.b16 %v336
        %v1056 = vunpack.c.h.b16 %v336
        %v1057 = vunpack.c.l.b16 %v337
        %v1058 = vunpack.c.h.b16 %v337
        %v1059 = vunpack.c.l.b16 %v338
        %v1060 = vunpack.c.h.b16 %v338
        %v1061 = vunpack.c.l.b16 %v339
        %v1062 = vunpack.c.h.b16 %v339
        %v1063 = vunpack.c.l.b16 %v340
        %v1064 = vunpack.c.h.b16 %v340
        %v1065 = vunpack.c.l.b16 %v341
        %v1066 = vunpack.c.h.b16 %v341
        %v1067 = vunpack.c.l.b16 %v342
        %v1068 = vunpack.c.h.b16 %v342
        %v1069 = vunpack.c.l.b16 %v343
        %v1070 = vunpack.c.h.b16 %v343
        %v1071 = vunpack.c.l.b16 %v344
        %v1072 = vunpack.c.h.b16 %v344
        %v1073 = vunpack.c.l.b16 %v345
        %v1074 = vunpack.c.h.b16 %v345
        %v1075 = vunpack.c.l.b16 %v346
        %v1076 = vunpack.c.h.b16 %v346
        %v1077 = vunpack.c.l.b16 %v347
        %v1078 = vunpack.c.h.b16 %v347
        %v1079 = vunpack.c.l.b16 %v348
        %v1080 = vunpack.c.h.b16 %v348
        %v1081 = vunpack.c.l.b16 %v349
        %v1082 = vunpack.c.h.b16 %v349
        %v1083 = vunpack.c.l.b16 %v350
        %v1084 = vunpack.c.h.b16 %v350
        %v1085 = vunpack.c.l.b16 %v351
        %v1086 = vunpack.c.h.b16 %v351
        %v1087 = vunpack.c.l.b16 %v352
        %v1088 = vunpack.c.h.b16 %v352
        %v1089 = vunpack.c.l.b16 %v353
        %v1090 = vunpack.c.h.b16 %v353
        %v1091 = vunpack.c.l.b16 %v354
        %v1092 = vunpack.c.h.b16 %v354
        %v1093 = vunpack.c.l.b16 %v355
        %v1094 = vunpack.c.h.b16 %v355
        %v1095 = vunpack.c.l.b16 %v356
        %v1096 = vunpack.c.h.b16 %v356
        %v1097 = vunpack.c.l.b16 %v357
        %v1098 = vunpack.c.h.b16 %v357
        %v1099 = vunpack.c.l.b16 %v358
        %v1100 = vunpack.c.h.b16 %v358
        %v1101 = vunpack.c.l.b16 %v359
        %v1102 = vunpack.c.h.b16 %v359
        %v1103 = vunpack.c.l.b16 %v360
        %v1104 = vunpack.c.h.b16 %v360
        %v1105 = vunpack.c.l.b16 %v361
        %v1106 = vunpack.c.h.b16 %v361
        %v1107 = vunpack.c.l.b16 %v362
        %v1108 = vunpack.c.h.b16 %v362
        %v1109 = vunpack.c.l.b16 %v363
        %v1110 = vunpack.c.h.b16 %v363
        %v1111 = vunpack.c.l.b16 %v364
        %v1112 = vunpack.c.h.b16 %v364
        %v1113 = vunpack.c.l.b16 %v365
        %v1114 = vunpack.c.h.b16 %v365
        %v1115 = vunpack.c.l.b16 %v366
        %v1116 = vunpack.c.h.b16 %v366
        %v1117 = vunpack.c.l.b16 %v367
        %v1118 = vunpack.c.h.b16 %v367
        %v1119 = vunpack.c.l.b16 %v368
        %v1120 = vunpack.c.h.b16 %v368
        %v1121 = vunpack.c.l.b16 %v369
        %v1122 = vunpack.c.h.b16 %v369
        %v1123 = vunpack.c.l.b16 %v370
        %v1124 = vunpack.c.h.b16 %v370
        %v1125 = vunpack.c.l.b16 %v371
        %v1126 = vunpack.c.h.b16 %v371
        %v1127 = vunpack.c.l.b16 %v372
        %v1128 = vunpack.c.h.b16 %v372
        %v1129 = vunpack.c.l.b16 %v373
        %v1130 = vunpack.c.h.b16 %v373
        %v1131 = vunpack.c.l.b16 %v374
        %v1132 = vunpack.c.h.b16 %v374
        %v1133 = vunpack.c.l.b16 %v375
        %v1134 = vunpack.c.h.b16 %v375
        %v1135 = vunpack.c.l.b16 %v376
        %v1136 = vunpack.c.h.b16 %v376
        %v1137 = vunpack.c.l.b16 %v377
        %v1138 = vunpack.c.h.b16 %v377
        %v1139 = vunpack.c.l.b16 %v378
        %v1140 = vunpack.c.h.b16 %v378
        %v1141 = vunpack.c.l.b16 %v379
        %v1142 = vunpack.c.h.b16 %v379
        %v1143 = vunpack.c.l.b16 %v380
        %v1144 = vunpack.c.h.b16 %v380
        %v1145 = vunpack.c.l.b16 %v381
        %v1146 = vunpack.c.h.b16 %v381
        %v1147 = vunpack.c.l.b16 %v382
        %v1148 = vunpack.c.h.b16 %v382
        %v1149 = vunpack.c.l.b16 %v383
        %v1150 = vunpack.c.h.b16 %v383
        %v1151 = vunpack.c.l.b16 %v384
        %v1152 = vunpack.c.h.b16 %v384
        %v1153 = vunpack.c.l.b16 %v385
        %v1154 = vunpack.c.h.b16 %v385
        %v1155 = vunpack.c.l.b16 %v386
        %v1156 = vunpack.c.h.b16 %v386
        %v1157 = vunpack.c.l.b16 %v387
        %v1158 = vunpack.c.h.b16 %v387
        %v1159 = vunpack.c.l.b16 %v388
        %v1160 = vunpack.c.h.b16 %v388
        %v1161 = vunpack.c.l.b16 %v389
        %v1162 = vunpack.c.h.b16 %v389
        %v1163 = vunpack.c.l.b16 %v390
        %v1164 = vunpack.c.h.b16 %v390
        %v1165 = vunpack.c.l.b16 %v391
        %v1166 = vunpack.c.h.b16 %v391
        %v1167 = vunpack.c.l.b16 %v392
        %v1168 = vunpack.c.h.b16 %v392
        %v1169 = vunpack.c.l.b16 %v393
        %v1170 = vunpack.c.h.b16 %v393
        %v1171 = vunpack.c.l.b16 %v394
        %v1172 = vunpack.c.h.b16 %v394
        %v1173 = vunpack.c.l.b16 %v395
        %v1174 = vunpack.c.h.b16 %v395
        %v1175 = vunpack.c.l.b16 %v396
        %v1176 = vunpack.c.h.b16 %v396
        %v1177 = vunpack.c.l.b16 %v397
        %v1178 = vunpack.c.h.b16 %v397
        %v1179 = vunpack.c.l.b16 %v398
        %v1180 = vunpack.c.h.b16 %v398
        %v1181 = vunpack.c.l.b16 %v399
        %v1182 = vunpack.c.h.b16 %v399
        %v1183 = vunpack.c.l.b16 %v400
        %v1184 = vunpack.c.h.b16 %v400
        %v1185 = vunpack.c.l.b16 %v401
        %v1186 = vunpack.c.h.b16 %v401
        %v1187 = vunpack.c.l.b16 %v402
        %v1188 = vunpack.c.h.b16 %v402
        %v1189 = vunpack.c.l.b16 %v403
        %v1190 = vunpack.c.h.b16 %v403
        %v1191 = vunpack.c.l.b16 %v404
        %v1192 = vunpack.c.h.b16 %v404
        %v1193 = vunpack.c.l.b16 %v405
        %v1194 = vunpack.c.h.b16 %v405
        %v1195 = vunpack.c.l.b16 %v406
        %v1196 = vunpack.c.h.b16 %v406
        %v1197 = vunpack.c.l.b16 %v407
        %v1198 = vunpack.c.h.b16 %v407
        %v1199 = vunpack.c.l.b16 %v408
        %v1200 = vunpack.c.h.b16 %v408
        %v1201 = vunpack.c.l.b16 %v409
        %v1202 = vunpack.c.h.b16 %v409
        %v1203 = vunpack.c.l.b16 %v410
        %v1204 = vunpack.c.h.b16 %v410
        %v1205 = vunpack.c.l.b16 %v411
        %v1206 = vunpack.c.h.b16 %v411
        %v1207 = vunpack.c.l.b16 %v412
        %v1208 = vunpack.c.h.b16 %v412
        %v1209 = vunpack.c.l.b16 %v413
        %v1210 = vunpack.c.h.b16 %v413
        %v1211 = vunpack.c.l.b16 %v414
        %v1212 = vunpack.c.h.b16 %v414
        %v1213 = vunpack.c.l.b16 %v415
        %v1214 = vunpack.c.h.b16 %v415
        %v1215 = vunpack.c.l.b16 %v416
        %v1216 = vunpack.c.h.b16 %v416
        %v1217 = vunpack.c.l.b16 %v417
        %v1218 = vunpack.c.h.b16 %v417
        %v1219 = vunpack.c.l.b16 %v418
        %v1220 = vunpack.c.h.b16 %v418
        %v1221 = vunpack.c.l.b16 %v419
        %v1222 = vunpack.c.h.b16 %v419
        %v1223 = vunpack.c.l.b16 %v420
        %v1224 = vunpack.c.h.b16 %v420
        %v1225 = vunpack.c.l.b16 %v421
        %v1226 = vunpack.c.h.b16 %v421
        %v1227 = vunpack.c.l.b16 %v422
        %v1228 = vunpack.c.h.b16 %v422
        %v1229 = vunpack.c.l.b16 %v423
        %v1230 = vunpack.c.h.b16 %v423
        %v1231 = vunpack.c.l.b16 %v424
        %v1232 = vunpack.c.h.b16 %v424
        %v1233 = vunpack.c.l.b16 %v425
        %v1234 = vunpack.c.h.b16 %v425
        %v1235 = vunpack.c.l.b16 %v426
        %v1236 = vunpack.c.h.b16 %v426
        %v1237 = vunpack.c.l.b16 %v427
        %v1238 = vunpack.c.h.b16 %v427
        %v1239 = vunpack.c.l.b16 %v428
        %v1240 = vunpack.c.h.b16 %v428
        %v1241 = vunpack.c.l.b16 %v429
        %v1242 = vunpack.c.h.b16 %v429
        %v1243 = vunpack.c.l.b16 %v430
        %v1244 = vunpack.c.h.b16 %v430
        %v1245 = vunpack.c.l.b16 %v431
        %v1246 = vunpack.c.h.b16 %v431
        %v1247 = vunpack.c.l.b16 %v432
        %v1248 = vunpack.c.h.b16 %v432
        %v1249 = vunpack.c.l.b16 %v433
        %v1250 = vunpack.c.h.b16 %v433
        %v1251 = vunpack.c.l.b16 %v434
        %v1252 = vunpack.c.h.b16 %v434
        %v1253 = vunpack.c.l.b16 %v435
        %v1254 = vunpack.c.h.b16 %v435
        %v1255 = vunpack.c.l.b16 %v436
        %v1256 = vunpack.c.h.b16 %v436
        %v1257 = vunpack.c.l.b16 %v437
        %v1258 = vunpack.c.h.b16 %v437
        %v1259 = vunpack.c.l.b16 %v438
        %v1260 = vunpack.c.h.b16 %v438
        %v1261 = vunpack.c.l.b16 %v439
        %v1262 = vunpack.c.h.b16 %v439
        %v1263 = vunpack.c.l.b16 %v440
        %v1264 = vunpack.c.h.b16 %v440
        %v1265 = vunpack.c.l.b16 %v441
        %v1266 = vunpack.c.h.b16 %v441
        %v1267 = vunpack.c.l.b16 %v442
        %v1268 = vunpack.c.h.b16 %v442
        %v1269 = vunpack.c.l.b16 %v443
        %v1270 = vunpack.c.h.b16 %v443
        %v1271 = vunpack.c.l.b16 %v444
        %v1272 = vunpack.c.h.b16 %v444
        %v1273 = vunpack.c.l.b16 %v445
        %v1274 = vunpack.c.h.b16 %v445
        %v1275 = vunpack.c.l.b16 %v446
        %v1276 = vunpack.c.h.b16 %v446
        %v1277 = vunpack.c.l.b16 %v447
        %v1278 = vunpack.c.h.b16 %v447
        %v1279 = vunpack.c.l.b16 %v448
        %v1280 = vunpack.c.h.b16 %v448
        %v1281 = vunpack.c.l.b16 %v449
        %v1282 = vunpack.c.h.b16 %v449
        %v1283 = vunpack.c.l.b16 %v450
        %v1284 = vunpack.c.h.b16 %v450
        %v1285 = vunpack.c.l.b16 %v451
        %v1286 = vunpack.c.h.b16 %v451
        %v1287 = vunpack.c.l.b16 %v452
        %v1288 = vunpack.c.h.b16 %v452
        %v1289 = vunpack.c.l.b16 %v453
        %v1290 = vunpack.c.h.b16 %v453
        %v1291 = vunpack.c.l.b16 %v454
        %v1292 = vunpack.c.h.b16 %v454
        %v1293 = vunpack.c.l.b16 %v455
        %v1294 = vunpack.c.h.b16 %v455
        %v1295 = vunpack.c.l.b16 %v456
        %v1296 = vunpack.c.h.b16 %v456
        %v1297 = vunpack.c.l.b16 %v457
        %v1298 = vunpack.c.h.b16 %v457
        %v1299 = vunpack.c.l.b16 %v458
        %v1300 = vunpack.c.h.b16 %v458
        %v1301 = vunpack.c.l.b16 %v459
        %v1302 = vunpack.c.h.b16 %v459
        %v1303 = vunpack.c.l.b16 %v460
        %v1304 = vunpack.c.h.b16 %v460
        %v1305 = vunpack.c.l.b16 %v461
        %v1306 = vunpack.c.h.b16 %v461
        %v1307 = vunpack.c.l.b16 %v462
        %v1308 = vunpack.c.h.b16 %v462
        %v1309 = vunpack.c.l.b16 %v463
        %v1310 = vunpack.c.h.b16 %v463
        %v1311 = vunpack.c.l.b16 %v464
        %v1312 = vunpack.c.h.b16 %v464
        %v1313 = vunpack.c.l.b16 %v465
        %v1314 = vunpack.c.h.b16 %v465
        %v1315 = vunpack.c.l.b16 %v466
        %v1316 = vunpack.c.h.b16 %v466
        %v1317 = vunpack.c.l.b16 %v467
        %v1318 = vunpack.c.h.b16 %v467
        %v1319 = vunpack.c.l.b16 %v468
        %v1320 = vunpack.c.h.b16 %v468
        %v1321 = vunpack.c.l.b16 %v469
        %v1322 = vunpack.c.h.b16 %v469
        %v1323 = vunpack.c.l.b16 %v470
        %v1324 = vunpack.c.h.b16 %v470
        %v1325 = vunpack.c.l.b16 %v471
        %v1326 = vunpack.c.h.b16 %v471
        %v1327 = vunpack.c.l.b16 %v472
        %v1328 = vunpack.c.h.b16 %v472
        %v1329 = vunpack.c.l.b16 %v473
        %v1330 = vunpack.c.h.b16 %v473
        %v1331 = vunpack.c.l.b16 %v474
        %v1332 = vunpack.c.h.b16 %v474
        %v1333 = vunpack.c.l.b16 %v475
        %v1334 = vunpack.c.h.b16 %v475
        %v1335 = vunpack.c.l.b16 %v476
        %v1336 = vunpack.c.h.b16 %v476
        %v1337 = vunpack.c.l.b16 %v477
        %v1338 = vunpack.c.h.b16 %v477
        %v1339 = vunpack.c.l.b16 %v478
        %v1340 = vunpack.c.h.b16 %v478
        %v1341 = vunpack.c.l.b16 %v479
        %v1342 = vunpack.c.h.b16 %v479
        %v1343 = vunpack.c.l.b16 %v480
        %v1344 = vunpack.c.h.b16 %v480
        %v1345 = vunpack.c.l.b16 %v481
        %v1346 = vunpack.c.h.b16 %v481
        %v1347 = vunpack.c.l.b16 %v482
        %v1348 = vunpack.c.h.b16 %v482
        %v1349 = vunpack.c.l.b16 %v483
        %v1350 = vunpack.c.h.b16 %v483
        %v1351 = vunpack.c.l.b16 %v484
        %v1352 = vunpack.c.h.b16 %v484
        %v1353 = vunpack.c.l.b16 %v485
        %v1354 = vunpack.c.h.b16 %v485
        %v1355 = vunpack.c.l.b16 %v486
        %v1356 = vunpack.c.h.b16 %v486
        %v1357 = vunpack.c.l.b16 %v487
        %v1358 = vunpack.c.h.b16 %v487
        %v1359 = vunpack.c.l.b16 %v488
        %v1360 = vunpack.c.h.b16 %v488
        %v1361 = vunpack.c.l.b16 %v489
        %v1362 = vunpack.c.h.b16 %v489
        %v1363 = vunpack.c.l.b16 %v490
        %v1364 = vunpack.c.h.b16 %v490
        %v1365 = vunpack.c.l.b16 %v491
        %v1366 = vunpack.c.h.b16 %v491
        %v1367 = vunpack.c.l.b16 %v492
        %v1368 = vunpack.c.h.b16 %v492
        %v1369 = vunpack.c.l.b16 %v493
        %v1370 = vunpack.c.h.b16 %v493
        %v1371 = vunpack.c.l.b16 %v494
        %v1372 = vunpack.c.h.b16 %v494
        %v1373 = vunpack.c.l.b16 %v495
        %v1374 = vunpack.c.h.b16 %v495
        %v1375 = vunpack.c.l.b16 %v496
        %v1376 = vunpack.c.h.b16 %v496
        %v1377 = vunpack.c.l.b16 %v497
        %v1378 = vunpack.c.h.b16 %v497
        %v1379 = vunpack.c.l.b16 %v498
        %v1380 = vunpack.c.h.b16 %v498
        %v1381 = vunpack.c.l.b16 %v499
        %v1382 = vunpack.c.h.b16 %v499
        %v1383 = vunpack.c.l.b16 %v500
        %v1384 = vunpack.c.h.b16 %v500
        %v1385 = vunpack.c.l.b16 %v501
        %v1386 = vunpack.c.h.b16 %v501
        %v1387 = vunpack.c.l.b16 %v502
        %v1388 = vunpack.c.h.b16 %v502
        %v1389 = vunpack.c.l.b16 %v503
        %v1390 = vunpack.c.h.b16 %v503
        %v1391 = vunpack.c.l.b16 %v504
        %v1392 = vunpack.c.h.b16 %v504
        %v1393 = vunpack.c.l.b16 %v505
        %v1394 = vunpack.c.h.b16 %v505
        %v1395 = vunpack.c.l.b16 %v506
        %v1396 = vunpack.c.h.b16 %v506
        %v1397 = vunpack.c.l.b16 %v507
        %v1398 = vunpack.c.h.b16 %v507
        %v1399 = vunpack.c.l.b16 %v508
        %v1400 = vunpack.c.h.b16 %v508
        %v1401 = vunpack.c.l.b16 %v509
        %v1402 = vunpack.c.h.b16 %v509
        %v1403 = vunpack.c.l.b16 %v510
        %v1404 = vunpack.c.h.b16 %v510
        %v1405 = vunpack.c.l.b16 %v511
        %v1406 = vunpack.c.h.b16 %v511
        %v1407 = vunpack.c.l.b16 %v512
        %v1408 = vunpack.c.h.b16 %v512
        %v1409 = vunpack.c.l.b16 %v513
        %v1410 = vunpack.c.h.b16 %v513
        %v1411 = vunpack.c.l.b16 %v514
        %v1412 = vunpack.c.h.b16 %v514
        %v1413 = vunpack.c.l.b16 %v515
        %v1414 = vunpack.c.h.b16 %v515
        %v1415 = vunpack.c.l.b16 %v516
        %v1416 = vunpack.c.h.b16 %v516
        %v1417 = vunpack.c.l.b16 %v517
        %v1418 = vunpack.c.h.b16 %v517
        %v1419 = vunpack.c.l.b16 %v518
        %v1420 = vunpack.c.h.b16 %v518
        %v1421 = vunpack.c.l.b16 %v519
        %v1422 = vunpack.c.h.b16 %v519
        %v1423 = vunpack.c.l.b16 %v520
        %v1424 = vunpack.c.h.b16 %v520
        %v1425 = vunpack.c.l.b16 %v521
        %v1426 = vunpack.c.h.b16 %v521
        %v1427 = vunpack.c.l.b16 %v522
        %v1428 = vunpack.c.h.b16 %v522
        %v1429 = vunpack.c.l.b16 %v523
        %v1430 = vunpack.c.h.b16 %v523
        %v1431 = vunpack.c.l.b16 %v524
        %v1432 = vunpack.c.h.b16 %v524
        %v1433 = vpack.c.b16 %v863, %v857
        %v1434 = vpack.c.b16 %v864, %v858
        %v1435 = vpack.c.b16 %v865, %v859
        %v1436 = vpack.c.b16 %v866, %v860
        %v1437 = vpack.c.b16 %v867, %v861
        %v1438 = vpack.c.b16 %v868, %v862
        %v1439 = vpack.c.b16 %v875, %v869
        %v1440 = vpack.c.b16 %v876, %v870
        %v1441 = vpack.c.b16 %v877, %v871
        %v1442 = vpack.c.b16 %v878, %v872
        %v1443 = vpack.c.b16 %v879, %v873
        %v1444 = vpack.c.b16 %v880, %v874
        %v1445 = vpack.c.b16 %v887, %v881
        %v1446 = vpack.c.b16 %v888, %v882
        %v1447 = vpack.c.b16 %v889, %v883
        %v1448 = vpack.c.b16 %v890, %v884
        %v1449 = vpack.c.b16 %v891, %v885
        %v1450 = vpack.c.b16 %v892, %v886
        %v1451 = vpack.c.b16 %v899, %v893
        %v1452 = vpack.c.b16 %v900, %v894
        %v1453 = vpack.c.b16 %v901, %v895
        %v1454 = vpack.c.b16 %v902, %v896
        %v1455 = vpack.c.b16 %v903, %v897
        %v1456 = vpack.c.b16 %v904, %v898
        %v1457 = vpack.c.b16 %v911, %v905
        %v1458 = vpack.c.b16 %v912, %v906
        %v1459 = vpack.c.b16 %v913, %v907
        %v1460 = vpack.c.b16 %v914, %v908
        %v1461 = vpack.c.b16 %v915, %v909
        %v1462 = vpack.c.b16 %v916, %v910
        %v1463 = vpack.c.b16 %v923, %v917
        %v1464 = vpack.c.b16 %v924, %v918
        %v1465 = vpack.c.b16 %v925, %v919
        %v1466 = vpack.c.b16 %v926, %v920
        %v1467 = vpack.c.b16 %v927, %v921
        %v1468 = vpack.c.b16 %v928, %v922
        %v1469 = vpack.c.b16 %v935, %v929
        %v1470 = vpack.c.b16 %v936, %v930
        %v1471 = vpack.c.b16 %v937, %v931
        %v1472 = vpack.c.b16 %v938, %v932
        %v1473 = vpack.c.b16 %v939, %v933
        %v1474 = vpack.c.b16 %v940, %v934
        %v1475 = vpack.c.b16 %v947, %v941
        %v1476 = vpack.c.b16 %v948, %v942
        %v1477 = vpack.c.b16 %v949, %v943
        %v1478 = vpack.c.b16 %v950, %v944
        %v1479 = vpack.c.b16 %v951, %v945
        %v1480 = vpack.c.b16 %v952, %v946
        %v1481 = vpack.c.b16 %v959, %v953
        %v1482 = vpack.c.b16 %v960, %v954
        %v1483 = vpack.c.b16 %v961, %v955
        %v1484 = vpack.c.b16 %v962, %v956
        %v1485 = vpack.c.b16 %v963, %v957
        %v1486 = vpack.c.b16 %v964, %v958
        %v1487 = vpack.c.b16 %v971, %v965
        %v1488 = vpack.c.b16 %v972, %v966
        %v1489 = vpack.c.b16 %v973, %v967
        %v1490 = vpack.c.b16 %v974, %v968
        %v1491 = vpack.c.b16 %v975, %v969
        %v1492 = vpack.c.b16 %v976, %v970
        %v1493 = vpack.c.b16 %v983, %v977
        %v1494 = vpack.c.b16 %v984, %v978
        %v1495 = vpack.c.b16 %v985, %v979
        %v1496 = vpack.c.b16 %v986, %v980
        %v1497 = vpack.c.b16 %v987, %v981
        %v1498 = vpack.c.b16 %v988, %v982
        %v1499 = vpack.c.b16 %v995, %v989
        %v1500 = vpack.c.b16 %v996, %v990
        %v1501 = vpack.c.b16 %v997, %v991
        %v1502 = vpack.c.b16 %v998, %v992
        %v1503 = vpack.c.b16 %v999, %v993
        %v1504 = vpack.c.b16 %v1000, %v994
        %v1505 = vpack.c.b16 %v1007, %v1001
        %v1506 = vpack.c.b16 %v1008, %v1002
        %v1507 = vpack.c.b16 %v1009, %v1003
        %v1508 = vpack.c.b16 %v1010, %v1004
        %v1509 = vpack.c.b16 %v1011, %v1005
        %v1510 = vpack.c.b16 %v1012, %v1006
        %v1511 = vpack.c.b16 %v1019, %v1013
        %v1512 = vpack.c.b16 %v1020, %v1014
        %v1513 = vpack.c.b16 %v1021, %v1015
        %v1514 = vpack.c.b16 %v1022, %v1016
        %v1515 = vpack.c.b16 %v1023, %v1017
        %v1516 = vpack.c.b16 %v1024, %v1018
        %v1517 = vpack.c.b16 %v1031, %v1025
        %v1518 = vpack.c.b16 %v1032, %v1026
        %v1519 = vpack.c.b16 %v1033, %v1027
        %v1520 = vpack.c.b16 %v1034, %v1028
        %v1521 = vpack.c.b16 %v1035, %v1029
        %v1522 = vpack.c.b16 %v1036, %v1030
        %v1523 = vpack.c.b16 %v1043, %v1037
        %v1524 = vpack.c.b16 %v1044, %v1038
        %v1525 = vpack.c.b16 %v1045, %v1039
        %v1526 = vpack.c.b16 %v1046, %v1040
        %v1527 = vpack.c.b16 %v1047, %v1041
        %v1528 = vpack.c.b16 %v1048, %v1042
        %v1529 = vpack.c.b16 %v1055, %v1049
        %v1530 = vpack.c.b16 %v1056, %v1050
        %v1531 = vpack.c.b16 %v1057, %v1051
        %v1532 = vpack.c.b16 %v1058, %v1052
        %v1533 = vpack.c.b16 %v1059, %v1053
        %v1534 = vpack.c.b16 %v1060, %v1054
        %v1535 = vpack.c.b16 %v1067, %v1061
        %v1536 = vpack.c.b16 %v1068, %v1062
        %v1537 = vpack.c.b16 %v1069, %v1063
        %v1538 = vpack.c.b16 %v1070, %v1064
        %v1539 = vpack.c.b16 %v1071, %v1065
        %v1540 = vpack.c.b16 %v1072, %v1066
        %v1541 = vpack.c.b16 %v1079, %v1073
        %v1542 = vpack.c.b16 %v1080, %v1074
        %v1543 = vpack.c.b16 %v1081, %v1075
        %v1544 = vpack.c.b16 %v1082, %v1076
        %v1545 = vpack.c.b16 %v1083, %v1077
        %v1546 = vpack.c.b16 %v1084, %v1078
        %v1547 = vpack.c.b16 %v1091, %v1085
        %v1548 = vpack.c.b16 %v1092, %v1086
        %v1549 = vpack.c.b16 %v1093, %v1087
        %v1550 = vpack.c.b16 %v1094, %v1088
        %v1551 = vpack.c.b16 %v1095, %v1089
        %v1552 = vpack.c.b16 %v1096, %v1090
        %v1553 = vpack.c.b16 %v1103, %v1097
        %v1554 = vpack.c.b16 %v1104, %v1098
        %v1555 = vpack.c.b16 %v1105, %v1099
        %v1556 = vpack.c.b16 %v1106, %v1100
        %v1557 = vpack.c.b16 %v1107, %v1101
        %v1558 = vpack.c.b16 %v1108, %v1102
        %v1559 = vpack.c.b16 %v1115, %v1109
        %v1560 = vpack.c.b16 %v1116, %v1110
        %v1561 = vpack.c.b16 %v1117, %v1111
        %v1562 = vpack.c.b16 %v1118, %v1112
        %v1563 = vpack.c.b16 %v1119, %v1113
        %v1564 = vpack.c.b16 %v1120, %v1114
        %v1565 = vpack.c.b16 %v1127, %v1121
        %v1566 = vpack.c.b16 %v1128, %v1122
        %v1567 = vpack.c.b16 %v1129, %v1123
        %v1568 = vpack.c.b16 %v1130, %v1124
        %v1569 = vpack.c.b16 %v1131, %v1125
        %v1570 = vpack.c.b16 %v1132, %v1126
        %v1571 = vpack.c.b16 %v1139, %v1133
        %v1572 = vpack.c.b16 %v1140, %v1134
        %v1573 = vpack.c.b16 %v1141, %v1135
        %v1574 = vpack.c.b16 %v1142, %v1136
        %v1575 = vpack.c.b16 %v1143, %v1137
        %v1576 = vpack.c.b16 %v1144, %v1138
        %v1577 = vpack.c.b16 %v1151, %v1145
        %v1578 = vpack.c.b16 %v1152, %v1146
        %v1579 = vpack.c.b16 %v1153, %v1147
        %v1580 = vpack.c.b16 %v1154, %v1148
        %v1581 = vpack.c.b16 %v1155, %v1149
        %v1582 = vpack.c.b16 %v1156, %v1150
        %v1583 = vpack.c.b16 %v1163, %v1157
        %v1584 = vpack.c.b16 %v1164, %v1158
        %v1585 = vpack.c.b16 %v1165, %v1159
        %v1586 = vpack.c.b16 %v1166, %v1160
        %v1587 = vpack.c.b16 %v1167, %v1161
        %v1588 = vpack.c.b16 %v1168, %v1162
        %v1589 = vpack.c.b16 %v1175, %v1169
        %v1590 = vpack.c.b16 %v1176, %v1170
        %v1591 = vpack.c.b16 %v1177, %v1171
        %v1592 = vpack.c.b16 %v1178, %v1172
        %v1593 = vpack.c.b16 %v1179, %v1173
        %v1594 = vpack.c.b16 %v1180, %v1174
        %v1595 = vpack.c.b16 %v1187, %v1181
        %v1596 = vpack.c.b16 %v1188, %v1182
        %v1597 = vpack.c.b16 %v1189, %v1183
        %v1598 = vpack.c.b16 %v1190, %v1184
        %v1599 = vpack.c.b16 %v1191, %v1185
        %v1600 = vpack.c.b16 %v1192, %v1186
        %v1601 = vpack.c.b16 %v1199, %v1193
        %v1602 = vpack.c.b16 %v1200, %v1194
        %v1603 = vpack.c.b16 %v1201, %v1195
        %v1604 = vpack.c.b16 %v1202, %v1196
        %v1605 = vpack.c.b16 %v1203, %v1197
        %v1606 = vpack.c.b16 %v1204, %v1198
        %v1607 = vpack.c.b16 %v1211, %v1205
        %v1608 = vpack.c.b16 %v1212, %v1206
        %v1609 = vpack.c.b16 %v1213, %v1207
        %v1610 = vpack.c.b16 %v1214, %v1208
        %v1611 = vpack.c.b16 %v1215, %v1209
        %v1612 = vpack.c.b16 %v1216, %v1210
        %v1613 = vpack.c.b16 %v1223, %v1217
        %v1614 = vpack.c.b16 %v1224, %v1218
        %v1615 = vpack.c.b16 %v1225, %v1219
        %v1616 = vpack.c.b16 %v1226, %v1220
        %v1617 = vpack.c.b16 %v1227, %v1221
        %v1618 = vpack.c.b16 %v1228, %v1222
        %v1619 = vpack.c.b16 %v1235, %v1229
        %v1620 = vpack.c.b16 %v1236, %v1230
        %v1621 = vpack.c.b16 %v1237, %v1231
        %v1622 = vpack.c.b16 %v1238, %v1232
        %v1623 = vpack.c.b16 %v1239, %v1233
        %v1624 = vpack.c.b16 %v1240, %v1234
        %v1625 = vpack.c.b16 %v1247, %v1241
        %v1626 = vpack.c.b16 %v1248, %v1242
        %v1627 = vpack.c.b16 %v1249, %v1243
        %v1628 = vpack.c.b16 %v1250, %v1244
        %v1629 = vpack.c.b16 %v1251, %v1245
        %v1630 = vpack.c.b16 %v1252, %v1246
        %v1631 = vpack.c.b16 %v1259, %v1253
        %v1632 = vpack.c.b16 %v1260, %v1254
        %v1633 = vpack.c.b16 %v1261, %v1255
        %v1634 = vpack.c.b16 %v1262, %v1256
        %v1635 = vpack.c.b16 %v1263, %v1257
        %v1636 = vpack.c.b16 %v1264, %v1258
        %v1637 = vpack.c.b16 %v1271, %v1265
        %v1638 = vpack.c.b16 %v1272, %v1266
        %v1639 = vpack.c.b16 %v1273, %v1267
        %v1640 = vpack.c.b16 %v1274, %v1268
        %v1641 = vpack.c.b16 %v1275, %v1269
        %v1642 = vpack.c.b16 %v1276, %v1270
        %v1643 = vpack.c.b16 %v1283, %v1277
        %v1644 = vpack.c.b16 %v1284, %v1278
        %v1645 = vpack.c.b16 %v1285, %v1279
        %v1646 = vpack.c.b16 %v1286, %v1280
        %v1647 = vpack.c.b16 %v1287, %v1281
        %v1648 = vpack.c.b16 %v1288, %v1282
        %v1649 = vpack.c.b16 %v1295, %v1289
        %v1650 = vpack.c.b16 %v1296, %v1290
        %v1651 = vpack.c.b16 %v1297, %v1291
        %v1652 = vpack.c.b16 %v1298, %v1292
        %v1653 = vpack.c.b16 %v1299, %v1293
        %v1654 = vpack.c.b16 %v1300, %v1294
        %v1655 = vpack.c.b16 %v1307, %v1301
        %v1656 = vpack.c.b16 %v1308, %v1302
        %v1657 = vpack.c.b16 %v1309, %v1303
        %v1658 = vpack.c.b16 %v1310, %v1304
        %v1659 = vpack.c.b16 %v1311, %v1305
        %v1660 = vpack.c.b16 %v1312, %v1306
        %v1661 = vpack.c.b16 %v1319, %v1313
        %v1662 = vpack.c.b16 %v1320, %v1314
        %v1663 = vpack.c.b16 %v1321, %v1315
        %v1664 = vpack.c.b16 %v1322, %v1316
        %v1665 = vpack.c.b16 %v1323, %v1317
        %v1666 = vpack.c.b16 %v1324, %v1318
        %v1667 = vpack.c.b16 %v1331, %v1325
        %v1668 = vpack.c.b16 %v1332, %v1326
        %v1669 = vpack.c.b16 %v1333, %v1327
        %v1670 = vpack.c.b16 %v1334, %v1328
        %v1671 = vpack.c.b16 %v1335, %v1329
        %v1672 = vpack.c.b16 %v1336, %v1330
        %v1673 = vpack.c.b16 %v1343, %v1337
        %v1674 = vpack.c.b16 %v1344, %v1338
        %v1675 = vpack.c.b16 %v1345, %v1339
        %v1676 = vpack.c.b16 %v1346, %v1340
        %v1677 = vpack.c.b16 %v1347, %v1341
        %v1678 = vpack.c.b16 %v1348, %v1342
        %v1679 = vpack.c.b16 %v1355, %v1349
        %v1680 = vpack.c.b16 %v1356, %v1350
        %v1681 = vpack.c.b16 %v1357, %v1351
        %v1682 = vpack.c.b16 %v1358, %v1352
        %v1683 = vpack.c.b16 %v1359, %v1353
        %v1684 = vpack.c.b16 %v1360, %v1354
        %v1685 = vpack.c.b16 %v1367, %v1361
        %v1686 = vpack.c.b16 %v1368, %v1362
        %v1687 = vpack.c.b16 %v1369, %v1363
        %v1688 = vpack.c.b16 %v1370, %v1364
        %v1689 = vpack.c.b16 %v1371, %v1365
        %v1690 = vpack.c.b16 %v1372, %v1366
        %v1691 = vpack.c.b16 %v1379, %v1373
        %v1692 = vpack.c.b16 %v1380, %v1374
        %v1693 = vpack.c.b16 %v1381, %v1375
        %v1694 = vpack.c.b16 %v1382, %v1376
        %v1695 = vpack.c.b16 %v1383, %v1377
        %v1696 = vpack.c.b16 %v1384, %v1378
        %v1697 = vpack.c.b16 %v1391, %v1385
        %v1698 = vpack.c.b16 %v1392, %v1386
        %v1699 = vpack.c.b16 %v1393, %v1387
        %v1700 = vpack.c.b16 %v1394, %v1388
        %v1701 = vpack.c.b16 %v1395, %v1389
        %v1702 = vpack.c.b16 %v1396, %v1390
        %v1703 = vpack.c.b16 %v1403, %v1397
        %v1704 = vpack.c.b16 %v1404, %v1398
        %v1705 = vpack.c.b16 %v1405, %v1399
        %v1706 = vpack.c.b16 %v1406, %v1400
        %v1707 = vpack.c.b16 %v1407, %v1401
        %v1708 = vpack.c.b16 %v1408, %v1402
        %v1709 = vpack.c.b16 %v1415, %v1409
        %v1710 = vpack.c.b16 %v1416, %v1410
        %v1711 = vpack.c.b16 %v1417, %v1411
        %v1712 = vpack.c.b16 %v1418, %v1412
        %v1713 = vpack.c.b16 %v1419, %v1413
        %v1714 = vpack.c.b16 %v1420, %v1414
        %v1715 = vpack.c.b16 %v1427, %v1421
        %v1716 = vpack.c.b16 %v1428, %v1422
        %v1717 = vpack.c.b16 %v1429, %v1423
        %v1718 = vpack.c.b16 %v1430, %v1424
        %v1719 = vpack.c.b16 %v1431, %v1425
        %v1720 = vpack.c.b16 %v1432, %v1426
        %2009 = vmatprep.subr.bf16.mxu0 %v1434
        %2010 = vmatpush1.bf16.msra.mxu0 %v1433
        %2011 = vmatprep.subr.bf16.mxu0 %v1440
        %2012 = vmatpush1.bf16.msra.mxu0 %v1439
        %2013 = vmatprep.subr.bf16.mxu0 %v1446
        %2014 = vmatpush1.bf16.msra.mxu0 %v1445
        %2015 = vmatprep.subr.bf16.mxu0 %v1452
        %2016 = vmatpush1.bf16.msra.mxu0 %v1451
        %2017 = vmatprep.subr.bf16.mxu0 %v1458
        %2018 = vmatpush1.bf16.msra.mxu0 %v1457
        %2019 = vmatprep.subr.bf16.mxu0 %v1464
        %2020 = vmatpush1.bf16.msra.mxu0 %v1463
        %2021 = vmatprep.subr.bf16.mxu0 %v1470
        %2022 = vmatpush1.bf16.msra.mxu0 %v1469
        %2023 = vmatprep.subr.bf16.mxu0 %v1476
        %2024 = vmatpush1.bf16.msra.mxu0 %v1475
        %2025 = vmatprep.subr.bf16.mxu0 %v1482
        %2026 = vmatpush1.bf16.msra.mxu0 %v1481
        %2027 = vmatprep.subr.bf16.mxu0 %v1488
        %2028 = vmatpush1.bf16.msra.mxu0 %v1487
        %2029 = vmatprep.subr.bf16.mxu0 %v1494
        %2030 = vmatpush1.bf16.msra.mxu0 %v1493
        %2031 = vmatprep.subr.bf16.mxu0 %v1500
        %2032 = vmatpush1.bf16.msra.mxu0 %v1499
        %2033 = vmatprep.subr.bf16.mxu0 %v1506
        %2034 = vmatpush1.bf16.msra.mxu0 %v1505
        %2035 = vmatprep.subr.bf16.mxu0 %v1512
        %2036 = vmatpush1.bf16.msra.mxu0 %v1511
        %2037 = vmatprep.subr.bf16.mxu0 %v1518
        %2038 = vmatpush1.bf16.msra.mxu0 %v1517
        %2039 = vmatprep.subr.bf16.mxu0 %v1524
        %2040 = vmatpush1.bf16.msra.mxu0 %v1523
        %2041 = vmatprep.mubr.bf16.mxu0 %v527
        %2042 = vmatmul.mubr.bf16.gmra.mrb[0].mxu0 %v526
        %v2043 = vpop.f32.mrb[0].mxu0
        %v2044 = vadd.f32 %v542, %v2043
        %v2045 = vpop.f32.mrb[0].mxu0
        %v2046 = vadd.f32 %v546, %v2045
        %v2047 = vpop.f32.mrb[0].mxu0
        %v2048 = vadd.f32 %v542, %v2047
        %v2049 = vpop.f32.mrb[0].mxu0
        %v2050 = vadd.f32 %v546, %v2049
        %2051 = vmatprep.mubr.bf16.mxu0 %v533
        %2052 = vmatmul.mubr.bf16.gmra.mrb[0].mxu0 %v532
        %v2053 = vpop.f32.mrb[0].mxu0
        %v2054 = vadd.f32 %v542, %v2053
        %v2055 = vpop.f32.mrb[0].mxu0
        %v2056 = vadd.f32 %v546, %v2055
        %v2057 = vpop.f32.mrb[0].mxu0
        %v2058 = vpop.f32.mrb[0].mxu0
        %2059 = vdwg.mxu0
        %2060 = vmatprep.subr.bf16.mxu0 %v1530
        %2061 = vmatpush1.bf16.msra.mxu0 %v1529
        %2062 = vmatprep.subr.bf16.mxu0 %v1536
        %2063 = vmatpush1.bf16.msra.mxu0 %v1535
        %2064 = vmatprep.subr.bf16.mxu0 %v1542
        %2065 = vmatpush1.bf16.msra.mxu0 %v1541
        %2066 = vmatprep.subr.bf16.mxu0 %v1548
        %2067 = vmatpush1.bf16.msra.mxu0 %v1547
        %2068 = vmatprep.subr.bf16.mxu0 %v1554
        %2069 = vmatpush1.bf16.msra.mxu0 %v1553
        %2070 = vmatprep.subr.bf16.mxu0 %v1560
        %2071 = vmatpush1.bf16.msra.mxu0 %v1559
        %2072 = vmatprep.subr.bf16.mxu0 %v1566
        %2073 = vmatpush1.bf16.msra.mxu0 %v1565
        %2074 = vmatprep.subr.bf16.mxu0 %v1572
        %2075 = vmatpush1.bf16.msra.mxu0 %v1571
        %2076 = vmatprep.subr.bf16.mxu0 %v1578
        %2077 = vmatpush1.bf16.msra.mxu0 %v1577
        %2078 = vmatprep.subr.bf16.mxu0 %v1584
        %2079 = vmatpush1.bf16.msra.mxu0 %v1583
        %2080 = vmatprep.subr.bf16.mxu0 %v1590
        %2081 = vmatpush1.bf16.msra.mxu0 %v1589
        %2082 = vmatprep.subr.bf16.mxu0 %v1596
        %2083 = vmatpush1.bf16.msra.mxu0 %v1595
        %2084 = vmatprep.subr.bf16.mxu0 %v1602
        %2085 = vmatpush1.bf16.msra.mxu0 %v1601
        %2086 = vmatprep.subr.bf16.mxu0 %v1608
        %2087 = vmatpush1.bf16.msra.mxu0 %v1607
        %2088 = vmatprep.subr.bf16.mxu0 %v1614
        %2089 = vmatpush1.bf16.msra.mxu0 %v1613
        %2090 = vmatprep.subr.bf16.mxu0 %v1620
        %2091 = vmatpush1.bf16.msra.mxu0 %v1619
        %2092 = vmatprep.mubr.bf16.mxu0 %v529
        %2093 = vmatmul.mubr.bf16.gmra.mrb[0].mxu0 %v528
        %v2094 = vpop.f32.mrb[0].mxu0
        %v2095 = vadd.f32 %v2044, %v2094
        %v2096 = vpop.f32.mrb[0].mxu0
        %v2097 = vadd.f32 %v2046, %v2096
        %v2098 = vpop.f32.mrb[0].mxu0
        %v2099 = vadd.f32 %v2048, %v2098
        %v2100 = vpop.f32.mrb[0].mxu0
        %v2101 = vadd.f32 %v2050, %v2100
        %2102 = vmatprep.mubr.bf16.mxu0 %v535
        %2103 = vmatmul.mubr.bf16.gmra.mrb[0].mxu0 %v534
        %v2104 = vpop.f32.mrb[0].mxu0
        %v2105 = vadd.f32 %v2054, %v2104
        %v2106 = vpop.f32.mrb[0].mxu0
        %v2107 = vadd.f32 %v2056, %v2106
        %v2108 = vpop.f32.mrb[0].mxu0
        %v2109 = vpop.f32.mrb[0].mxu0
        %2110 = vdwg.mxu0
        %2111 = vmatprep.subr.bf16.mxu0 %v1626
        %2112 = vmatpush1.bf16.msra.mxu0 %v1625
        %2113 = vmatprep.subr.bf16.mxu0 %v1632
        %2114 = vmatpush1.bf16.msra.mxu0 %v1631
        %2115 = vmatprep.subr.bf16.mxu0 %v1638
        %2116 = vmatpush1.bf16.msra.mxu0 %v1637
        %2117 = vmatprep.subr.bf16.mxu0 %v1644
        %2118 = vmatpush1.bf16.msra.mxu0 %v1643
        %2119 = vmatprep.subr.bf16.mxu0 %v1650
        %2120 = vmatpush1.bf16.msra.mxu0 %v1649
        %2121 = vmatprep.subr.bf16.mxu0 %v1656
        %2122 = vmatpush1.bf16.msra.mxu0 %v1655
        %2123 = vmatprep.subr.bf16.mxu0 %v1662
        %2124 = vmatpush1.bf16.msra.mxu0 %v1661
        %2125 = vmatprep.subr.bf16.mxu0 %v1668
        %2126 = vmatpush1.bf16.msra.mxu0 %v1667
        %2127 = vmatprep.subr.bf16.mxu0 %v1674
        %2128 = vmatpush1.bf16.msra.mxu0 %v1673
        %2129 = vmatprep.subr.bf16.mxu0 %v1680
        %2130 = vmatpush1.bf16.msra.mxu0 %v1679
        %2131 = vmatprep.subr.bf16.mxu0 %v1686
        %2132 = vmatpush1.bf16.msra.mxu0 %v1685
        %2133 = vmatprep.subr.bf16.mxu0 %v1692
        %2134 = vmatpush1.bf16.msra.mxu0 %v1691
        %2135 = vmatprep.subr.bf16.mxu0 %v1698
        %2136 = vmatpush1.bf16.msra.mxu0 %v1697
        %2137 = vmatprep.subr.bf16.mxu0 %v1704
        %2138 = vmatpush1.bf16.msra.mxu0 %v1703
        %2139 = vmatprep.subr.bf16.mxu0 %v1710
        %2140 = vmatpush1.bf16.msra.mxu0 %v1709
        %2141 = vmatprep.subr.bf16.mxu0 %v1716
        %2142 = vmatpush1.bf16.msra.mxu0 %v1715
        %2143 = vmatprep.mubr.bf16.mxu0 %v531
        %2144 = vmatmul.mubr.bf16.gmra.mrb[0].mxu0 %v530
        %v2145 = vpop.f32.mrb[0].mxu0
        %v2146 = vadd.f32 %v2095, %v2145
        %v2147 = vpop.f32.mrb[0].mxu0
        %v2148 = vadd.f32 %v2097, %v2147
        %v2149 = vpop.f32.mrb[0].mxu0
        %v2150 = vadd.f32 %v2099, %v2149
        %v2151 = vpop.f32.mrb[0].mxu0
        %v2152 = vadd.f32 %v2101, %v2151
        %2153 = vmatprep.mubr.bf16.mxu0 %v537
        %2154 = vmatmul.mubr.bf16.gmra.mrb[0].mxu0 %v536
        %v2155 = vpop.f32.mrb[0].mxu0
        %v2156 = vadd.f32 %v2105, %v2155
        %v2157 = vpop.f32.mrb[0].mxu0
        %v2158 = vadd.f32 %v2107, %v2157
        %v2159 = vpop.f32.mrb[0].mxu0
        %v2160 = vpop.f32.mrb[0].mxu0
        %2161 = vdwg.mxu0
        %2162 = vmatprep.subr.bf16.mxu0 %v1436
        %2163 = vmatpush1.bf16.msra.mxu0 %v1435
        %2164 = vmatprep.subr.bf16.mxu0 %v1442
        %2165 = vmatpush1.bf16.msra.mxu0 %v1441
        %2166 = vmatprep.subr.bf16.mxu0 %v1448
        %2167 = vmatpush1.bf16.msra.mxu0 %v1447
        %2168 = vmatprep.subr.bf16.mxu0 %v1454
        %2169 = vmatpush1.bf16.msra.mxu0 %v1453
        %2170 = vmatprep.subr.bf16.mxu0 %v1460
        %2171 = vmatpush1.bf16.msra.mxu0 %v1459
        %2172 = vmatprep.subr.bf16.mxu0 %v1466
        %2173 = vmatpush1.bf16.msra.mxu0 %v1465
        %2174 = vmatprep.subr.bf16.mxu0 %v1472
        %2175 = vmatpush1.bf16.msra.mxu0 %v1471
        %2176 = vmatprep.subr.bf16.mxu0 %v1478
        %2177 = vmatpush1.bf16.msra.mxu0 %v1477
        %2178 = vmatprep.subr.bf16.mxu0 %v1484
        %2179 = vmatpush1.bf16.msra.mxu0 %v1483
        %2180 = vmatprep.subr.bf16.mxu0 %v1490
        %2181 = vmatpush1.bf16.msra.mxu0 %v1489
        %2182 = vmatprep.subr.bf16.mxu0 %v1496
        %2183 = vmatpush1.bf16.msra.mxu0 %v1495
        %2184 = vmatprep.subr.bf16.mxu0 %v1502
        %2185 = vmatpush1.bf16.msra.mxu0 %v1501
        %2186 = vmatprep.subr.bf16.mxu0 %v1508
        %2187 = vmatpush1.bf16.msra.mxu0 %v1507
        %2188 = vmatprep.subr.bf16.mxu0 %v1514
        %2189 = vmatpush1.bf16.msra.mxu0 %v1513
        %2190 = vmatprep.subr.bf16.mxu0 %v1520
        %2191 = vmatpush1.bf16.msra.mxu0 %v1519
        %2192 = vmatprep.subr.bf16.mxu0 %v1526
        %2193 = vmatpush1.bf16.msra.mxu0 %v1525
        %2194 = vmatprep.mubr.bf16.mxu0 %v527
        %2195 = vmatmul.mubr.bf16.gmra.mrb[0].mxu0 %v526
        %v2196 = vpop.f32.mrb[0].mxu0
        %v2197 = vadd.f32 %v550, %v2196
        %v2198 = vpop.f32.mrb[0].mxu0
        %v2199 = vadd.f32 %v554, %v2198
        %v2200 = vpop.f32.mrb[0].mxu0
        %v2201 = vadd.f32 %v550, %v2200
        %v2202 = vpop.f32.mrb[0].mxu0
        %v2203 = vadd.f32 %v554, %v2202
        %2204 = vmatprep.mubr.bf16.mxu0 %v533
        %2205 = vmatmul.mubr.bf16.gmra.mrb[0].mxu0 %v532
        %v2206 = vpop.f32.mrb[0].mxu0
        %v2207 = vadd.f32 %v550, %v2206
        %v2208 = vpop.f32.mrb[0].mxu0
        %v2209 = vadd.f32 %v554, %v2208
        %v2210 = vpop.f32.mrb[0].mxu0
        %v2211 = vpop.f32.mrb[0].mxu0
        %2212 = vdwg.mxu0
        %2213 = vmatprep.subr.bf16.mxu0 %v1532
        %2214 = vmatpush1.bf16.msra.mxu0 %v1531
        %2215 = vmatprep.subr.bf16.mxu0 %v1538
        %2216 = vmatpush1.bf16.msra.mxu0 %v1537
        %2217 = vmatprep.subr.bf16.mxu0 %v1544
        %2218 = vmatpush1.bf16.msra.mxu0 %v1543
        %2219 = vmatprep.subr.bf16.mxu0 %v1550
        %2220 = vmatpush1.bf16.msra.mxu0 %v1549
        %2221 = vmatprep.subr.bf16.mxu0 %v1556
        %2222 = vmatpush1.bf16.msra.mxu0 %v1555
        %2223 = vmatprep.subr.bf16.mxu0 %v1562
        %2224 = vmatpush1.bf16.msra.mxu0 %v1561
        %2225 = vmatprep.subr.bf16.mxu0 %v1568
        %2226 = vmatpush1.bf16.msra.mxu0 %v1567
        %2227 = vmatprep.subr.bf16.mxu0 %v1574
        %2228 = vmatpush1.bf16.msra.mxu0 %v1573
        %2229 = vmatprep.subr.bf16.mxu0 %v1580
        %2230 = vmatpush1.bf16.msra.mxu0 %v1579
        %2231 = vmatprep.subr.bf16.mxu0 %v1586
        %2232 = vmatpush1.bf16.msra.mxu0 %v1585
        %2233 = vmatprep.subr.bf16.mxu0 %v1592
        %2234 = vmatpush1.bf16.msra.mxu0 %v1591
        %2235 = vmatprep.subr.bf16.mxu0 %v1598
        %2236 = vmatpush1.bf16.msra.mxu0 %v1597
        %2237 = vmatprep.subr.bf16.mxu0 %v1604
        %2238 = vmatpush1.bf16.msra.mxu0 %v1603
        %2239 = vmatprep.subr.bf16.mxu0 %v1610
        %2240 = vmatpush1.bf16.msra.mxu0 %v1609
        %2241 = vmatprep.subr.bf16.mxu0 %v1616
        %2242 = vmatpush1.bf16.msra.mxu0 %v1615
        %2243 = vmatprep.subr.bf16.mxu0 %v1622
        %2244 = vmatpush1.bf16.msra.mxu0 %v1621
        %2245 = vmatprep.mubr.bf16.mxu0 %v529
        %2246 = vmatmul.mubr.bf16.gmra.mrb[0].mxu0 %v528
        %v2247 = vpop.f32.mrb[0].mxu0
        %v2248 = vadd.f32 %v2197, %v2247
        %v2249 = vpop.f32.mrb[0].mxu0
        %v2250 = vadd.f32 %v2199, %v2249
        %v2251 = vpop.f32.mrb[0].mxu0
        %v2252 = vadd.f32 %v2201, %v2251
        %v2253 = vpop.f32.mrb[0].mxu0
        %v2254 = vadd.f32 %v2203, %v2253
        %2255 = vmatprep.mubr.bf16.mxu0 %v535
        %2256 = vmatmul.mubr.bf16.gmra.mrb[0].mxu0 %v534
        %v2257 = vpop.f32.mrb[0].mxu0
        %v2258 = vadd.f32 %v2207, %v2257
        %v2259 = vpop.f32.mrb[0].mxu0
        %v2260 = vadd.f32 %v2209, %v2259
        %v2261 = vpop.f32.mrb[0].mxu0
        %v2262 = vpop.f32.mrb[0].mxu0
        %2263 = vdwg.mxu0
        %2264 = vmatprep.subr.bf16.mxu0 %v1628
        %2265 = vmatpush1.bf16.msra.mxu0 %v1627
        %2266 = vmatprep.subr.bf16.mxu0 %v1634
        %2267 = vmatpush1.bf16.msra.mxu0 %v1633
        %2268 = vmatprep.subr.bf16.mxu0 %v1640
        %2269 = vmatpush1.bf16.msra.mxu0 %v1639
        %2270 = vmatprep.subr.bf16.mxu0 %v1646
        %2271 = vmatpush1.bf16.msra.mxu0 %v1645
        %2272 = vmatprep.subr.bf16.mxu0 %v1652
        %2273 = vmatpush1.bf16.msra.mxu0 %v1651
        %2274 = vmatprep.subr.bf16.mxu0 %v1658
        %2275 = vmatpush1.bf16.msra.mxu0 %v1657
        %2276 = vmatprep.subr.bf16.mxu0 %v1664
        %2277 = vmatpush1.bf16.msra.mxu0 %v1663
        %2278 = vmatprep.subr.bf16.mxu0 %v1670
        %2279 = vmatpush1.bf16.msra.mxu0 %v1669
        %2280 = vmatprep.subr.bf16.mxu0 %v1676
        %2281 = vmatpush1.bf16.msra.mxu0 %v1675
        %2282 = vmatprep.subr.bf16.mxu0 %v1682
        %2283 = vmatpush1.bf16.msra.mxu0 %v1681
        %2284 = vmatprep.subr.bf16.mxu0 %v1688
        %2285 = vmatpush1.bf16.msra.mxu0 %v1687
        %2286 = vmatprep.subr.bf16.mxu0 %v1694
        %2287 = vmatpush1.bf16.msra.mxu0 %v1693
        %2288 = vmatprep.subr.bf16.mxu0 %v1700
        %2289 = vmatpush1.bf16.msra.mxu0 %v1699
        %2290 = vmatprep.subr.bf16.mxu0 %v1706
        %2291 = vmatpush1.bf16.msra.mxu0 %v1705
        %2292 = vmatprep.subr.bf16.mxu0 %v1712
        %2293 = vmatpush1.bf16.msra.mxu0 %v1711
        %2294 = vmatprep.subr.bf16.mxu0 %v1718
        %2295 = vmatpush1.bf16.msra.mxu0 %v1717
        %2296 = vmatprep.mubr.bf16.mxu0 %v531
        %2297 = vmatmul.mubr.bf16.gmra.mrb[0].mxu0 %v530
        %v2298 = vpop.f32.mrb[0].mxu0
        %v2299 = vadd.f32 %v2248, %v2298
        %v2300 = vpop.f32.mrb[0].mxu0
        %v2301 = vadd.f32 %v2250, %v2300
        %v2302 = vpop.f32.mrb[0].mxu0
        %v2303 = vadd.f32 %v2252, %v2302
        %v2304 = vpop.f32.mrb[0].mxu0
        %v2305 = vadd.f32 %v2254, %v2304
        %2306 = vmatprep.mubr.bf16.mxu0 %v537
        %2307 = vmatmul.mubr.bf16.gmra.mrb[0].mxu0 %v536
        %v2308 = vpop.f32.mrb[0].mxu0
        %v2309 = vadd.f32 %v2258, %v2308
        %v2310 = vpop.f32.mrb[0].mxu0
        %v2311 = vadd.f32 %v2260, %v2310
        %v2312 = vpop.f32.mrb[0].mxu0
        %v2313 = vpop.f32.mrb[0].mxu0
        %2314 = vdwg.mxu0
        %2315 = vmatprep.subr.bf16.mxu0 %v1438
        %2316 = vmatpush1.bf16.msra.mxu0 %v1437
        %2317 = vmatprep.subr.bf16.mxu0 %v1444
        %2318 = vmatpush1.bf16.msra.mxu0 %v1443
        %2319 = vmatprep.subr.bf16.mxu0 %v1450
        %2320 = vmatpush1.bf16.msra.mxu0 %v1449
        %2321 = vmatprep.subr.bf16.mxu0 %v1456
        %2322 = vmatpush1.bf16.msra.mxu0 %v1455
        %2323 = vmatprep.subr.bf16.mxu0 %v1462
        %2324 = vmatpush1.bf16.msra.mxu0 %v1461
        %2325 = vmatprep.subr.bf16.mxu0 %v1468
        %2326 = vmatpush1.bf16.msra.mxu0 %v1467
        %2327 = vmatprep.subr.bf16.mxu0 %v1474
        %2328 = vmatpush1.bf16.msra.mxu0 %v1473
        %2329 = vmatprep.subr.bf16.mxu0 %v1480
        %2330 = vmatpush1.bf16.msra.mxu0 %v1479
        %2331 = vmatprep.subr.bf16.mxu0 %v1486
        %2332 = vmatpush1.bf16.msra.mxu0 %v1485
        %2333 = vmatprep.subr.bf16.mxu0 %v1492
        %2334 = vmatpush1.bf16.msra.mxu0 %v1491
        %2335 = vmatprep.subr.bf16.mxu0 %v1498
        %2336 = vmatpush1.bf16.msra.mxu0 %v1497
        %2337 = vmatprep.subr.bf16.mxu0 %v1504
        %2338 = vmatpush1.bf16.msra.mxu0 %v1503
        %2339 = vmatprep.subr.bf16.mxu0 %v1510
        %2340 = vmatpush1.bf16.msra.mxu0 %v1509
        %2341 = vmatprep.subr.bf16.mxu0 %v1516
        %2342 = vmatpush1.bf16.msra.mxu0 %v1515
        %2343 = vmatprep.subr.bf16.mxu0 %v1522
        %2344 = vmatpush1.bf16.msra.mxu0 %v1521
        %2345 = vmatprep.subr.bf16.mxu0 %v1528
        %2346 = vmatpush1.bf16.msra.mxu0 %v1527
        %2347 = vmatprep.mubr.bf16.mxu0 %v527
        %2348 = vmatmul.mubr.bf16.gmra.mrb[0].mxu0 %v526
        %v2349 = vpop.f32.mrb[0].mxu0
        %v2350 = vadd.f32 %v558, %v2349
        %v2351 = vpop.f32.mrb[0].mxu0
        %v2352 = vadd.f32 %v562, %v2351
        %v2353 = vpop.f32.mrb[0].mxu0
        %v2354 = vadd.f32 %v558, %v2353
        %v2355 = vpop.f32.mrb[0].mxu0
        %v2356 = vadd.f32 %v562, %v2355
        %2357 = vmatprep.mubr.bf16.mxu0 %v533
        %2358 = vmatmul.mubr.bf16.gmra.mrb[0].mxu0 %v532
        %v2359 = vpop.f32.mrb[0].mxu0
        %v2360 = vadd.f32 %v558, %v2359
        %v2361 = vpop.f32.mrb[0].mxu0
        %v2362 = vadd.f32 %v562, %v2361
        %v2363 = vpop.f32.mrb[0].mxu0
        %v2364 = vpop.f32.mrb[0].mxu0
        %2365 = vdwg.mxu0
        %2366 = vmatprep.subr.bf16.mxu0 %v1534
        %2367 = vmatpush1.bf16.msra.mxu0 %v1533
        %2368 = vmatprep.subr.bf16.mxu0 %v1540
        %2369 = vmatpush1.bf16.msra.mxu0 %v1539
        %2370 = vmatprep.subr.bf16.mxu0 %v1546
        %2371 = vmatpush1.bf16.msra.mxu0 %v1545
        %2372 = vmatprep.subr.bf16.mxu0 %v1552
        %2373 = vmatpush1.bf16.msra.mxu0 %v1551
        %2374 = vmatprep.subr.bf16.mxu0 %v1558
        %2375 = vmatpush1.bf16.msra.mxu0 %v1557
        %2376 = vmatprep.subr.bf16.mxu0 %v1564
        %2377 = vmatpush1.bf16.msra.mxu0 %v1563
        %2378 = vmatprep.subr.bf16.mxu0 %v1570
        %2379 = vmatpush1.bf16.msra.mxu0 %v1569
        %2380 = vmatprep.subr.bf16.mxu0 %v1576
        %2381 = vmatpush1.bf16.msra.mxu0 %v1575
        %2382 = vmatprep.subr.bf16.mxu0 %v1582
        %2383 = vmatpush1.bf16.msra.mxu0 %v1581
        %2384 = vmatprep.subr.bf16.mxu0 %v1588
        %2385 = vmatpush1.bf16.msra.mxu0 %v1587
        %2386 = vmatprep.subr.bf16.mxu0 %v1594
        %2387 = vmatpush1.bf16.msra.mxu0 %v1593
        %2388 = vmatprep.subr.bf16.mxu0 %v1600
        %2389 = vmatpush1.bf16.msra.mxu0 %v1599
        %2390 = vmatprep.subr.bf16.mxu0 %v1606
        %2391 = vmatpush1.bf16.msra.mxu0 %v1605
        %2392 = vmatprep.subr.bf16.mxu0 %v1612
        %2393 = vmatpush1.bf16.msra.mxu0 %v1611
        %2394 = vmatprep.subr.bf16.mxu0 %v1618
        %2395 = vmatpush1.bf16.msra.mxu0 %v1617
        %2396 = vmatprep.subr.bf16.mxu0 %v1624
        %2397 = vmatpush1.bf16.msra.mxu0 %v1623
        %2398 = vmatprep.mubr.bf16.mxu0 %v529
        %2399 = vmatmul.mubr.bf16.gmra.mrb[0].mxu0 %v528
        %v2400 = vpop.f32.mrb[0].mxu0
        %v2401 = vadd.f32 %v2350, %v2400
        %v2402 = vpop.f32.mrb[0].mxu0
        %v2403 = vadd.f32 %v2352, %v2402
        %v2404 = vpop.f32.mrb[0].mxu0
        %v2405 = vadd.f32 %v2354, %v2404
        %v2406 = vpop.f32.mrb[0].mxu0
        %v2407 = vadd.f32 %v2356, %v2406
        %2408 = vmatprep.mubr.bf16.mxu0 %v535
        %2409 = vmatmul.mubr.bf16.gmra.mrb[0].mxu0 %v534
        %v2410 = vpop.f32.mrb[0].mxu0
        %v2411 = vadd.f32 %v2360, %v2410
        %v2412 = vpop.f32.mrb[0].mxu0
        %v2413 = vadd.f32 %v2362, %v2412
        %v2414 = vpop.f32.mrb[0].mxu0
        %v2415 = vpop.f32.mrb[0].mxu0
        %2416 = vdwg.mxu0
        %2417 = vmatprep.subr.bf16.mxu0 %v1630
        %2418 = vmatpush1.bf16.msra.mxu0 %v1629
        %2419 = vmatprep.subr.bf16.mxu0 %v1636
        %2420 = vmatpush1.bf16.msra.mxu0 %v1635
        %2421 = vmatprep.subr.bf16.mxu0 %v1642
        %2422 = vmatpush1.bf16.msra.mxu0 %v1641
        %2423 = vmatprep.subr.bf16.mxu0 %v1648
        %2424 = vmatpush1.bf16.msra.mxu0 %v1647
        %2425 = vmatprep.subr.bf16.mxu0 %v1654
        %2426 = vmatpush1.bf16.msra.mxu0 %v1653
        %2427 = vmatprep.subr.bf16.mxu0 %v1660
        %2428 = vmatpush1.bf16.msra.mxu0 %v1659
        %2429 = vmatprep.subr.bf16.mxu0 %v1666
        %2430 = vmatpush1.bf16.msra.mxu0 %v1665
        %2431 = vmatprep.subr.bf16.mxu0 %v1672
        %2432 = vmatpush1.bf16.msra.mxu0 %v1671
        %2433 = vmatprep.subr.bf16.mxu0 %v1678
        %2434 = vmatpush1.bf16.msra.mxu0 %v1677
        %2435 = vmatprep.subr.bf16.mxu0 %v1684
        %2436 = vmatpush1.bf16.msra.mxu0 %v1683
        %2437 = vmatprep.subr.bf16.mxu0 %v1690
        %2438 = vmatpush1.bf16.msra.mxu0 %v1689
        %2439 = vmatprep.subr.bf16.mxu0 %v1696
        %2440 = vmatpush1.bf16.msra.mxu0 %v1695
        %2441 = vmatprep.subr.bf16.mxu0 %v1702
        %2442 = vmatpush1.bf16.msra.mxu0 %v1701
        %2443 = vmatprep.subr.bf16.mxu0 %v1708
        %2444 = vmatpush1.bf16.msra.mxu0 %v1707
        %2445 = vmatprep.subr.bf16.mxu0 %v1714
        %2446 = vmatpush1.bf16.msra.mxu0 %v1713
        %2447 = vmatprep.subr.bf16.mxu0 %v1720
        %2448 = vmatpush1.bf16.msra.mxu0 %v1719
        %2449 = vmatprep.mubr.bf16.mxu0 %v531
        %2450 = vmatmul.mubr.bf16.gmra.mrb[0].mxu0 %v530
        %v2451 = vpop.f32.mrb[0].mxu0
        %v2452 = vadd.f32 %v2401, %v2451
        %v2453 = vpop.f32.mrb[0].mxu0
        %v2454 = vadd.f32 %v2403, %v2453
        %v2455 = vpop.f32.mrb[0].mxu0
        %v2456 = vadd.f32 %v2405, %v2455
        %v2457 = vpop.f32.mrb[0].mxu0
        %v2458 = vadd.f32 %v2407, %v2457
        %2459 = vmatprep.mubr.bf16.mxu0 %v537
        %2460 = vmatmul.mubr.bf16.gmra.mrb[0].mxu0 %v536
        %v2461 = vpop.f32.mrb[0].mxu0
        %v2462 = vadd.f32 %v2411, %v2461
        %v2463 = vpop.f32.mrb[0].mxu0
        %v2464 = vadd.f32 %v2413, %v2463
        %v2465 = vpop.f32.mrb[0].mxu0
        %v2466 = vpop.f32.mrb[0].mxu0
        %2467 = vdwg.mxu0
        %v2468 = vadd.f32 %v2146, %v219
        %v2469 = vadd.f32 %v2148, %v220
        %v2470 = vadd.f32 %v2299, %v221
        %v2471 = vadd.f32 %v2301, %v222
        %v2472 = vadd.f32 %v2452, %v223
        %v2473 = vadd.f32 %v2454, %v224
        %v2474 = vadd.f32 %v2150, %v225
        %v2475 = vadd.f32 %v2152, %v226
        %v2476 = vadd.f32 %v2303, %v227
        %v2477 = vadd.f32 %v2305, %v228
        %v2478 = vadd.f32 %v2456, %v229
        %v2479 = vadd.f32 %v2458, %v230
        %v2480 = vadd.f32 %v2156, %v231
        %v2481 = vadd.f32 %v2158, %v232
        %v2482 = vadd.f32 %v2309, %v233
        %v2483 = vadd.f32 %v2311, %v234
        %v2484 = vadd.f32 %v2462, %v235
        %v2485 = vadd.f32 %v2464, %v236
        %v2486 = vmul.f32 %v2468, %v2468
        %v2487 = vmul.f32 %v2469, %v2469
        %v2488 = vmul.f32 %v2470, %v2470
        %v2489 = vmul.f32 %v2471, %v2471
        %v2490 = vmul.f32 %v2472, %v2472
        %v2491 = vmul.f32 %v2473, %v2473
        %v2492 = vmul.f32 %v2474, %v2474
        %v2493 = vmul.f32 %v2475, %v2475
        %v2494 = vmul.f32 %v2476, %v2476
        %v2495 = vmul.f32 %v2477, %v2477
        %v2496 = vmul.f32 %v2478, %v2478
        %v2497 = vmul.f32 %v2479, %v2479
        %v2498 = vmul.f32 %v2480, %v2480
        %v2499 = vmul.f32 %v2481, %v2481
        %v2500 = vmul.f32 %v2482, %v2482
        %v2501 = vmul.f32 %v2483, %v2483
        %v2502 = vmul.f32 %v2484, %v2484
        %v2503 = vmul.f32 %v2485, %v2485
        %v2504 = vadd.f32 %v2486, %v2487
        %v2505 = vadd.f32 %v2504, %v2488
        %v2506 = vadd.f32 %v2505, %v2489
        %v2507 = vadd.f32 %v2506, %v2490
        %v2508 = vadd.f32 %v2507, %v2491
        %2509 = vadd.xlane.f32.xlu0 %v2508
        %v2510 = vpop.xlane.xlu0 %2509
        %v2511 = vadd.f32 %v2492, %v2493
        %v2512 = vadd.f32 %v2511, %v2494
        %v2513 = vadd.f32 %v2512, %v2495
        %v2514 = vadd.f32 %v2513, %v2496
        %v2515 = vadd.f32 %v2514, %v2497
        %2516 = vadd.xlane.f32.xlu0 %v2515
        %v2517 = vpop.xlane.xlu0 %2516
        %v2518 = vadd.f32 %v2498, %v2499
        %v2519 = vadd.f32 %v2518, %v2500
        %v2520 = vadd.f32 %v2519, %v2501
        %v2521 = vadd.f32 %v2520, %v2502
        %v2522 = vadd.f32 %v2521, %v2503
        %2523 = vadd.xlane.f32.xlu0 %v2522
        %v2524 = vpop.xlane.xlu0 %2523
        %v2525 = vmax.f32 %v2510, 1e-24
        %v2526 = vmax.f32 %v2517, 1e-24
        %v2527 = vmax.f32 %v2524, 1e-24
        %v2528 = vrsqrt.pop %v2525
        %v2529 = vrsqrt.pop %v2526
        %v2530 = vrsqrt.pop %v2527
        %v2531 = vmul.f32 %v2468, %v2528
        %v2532 = vmul.f32 %v2469, %v2528
        %v2533 = vmul.f32 %v2470, %v2528
        %v2534 = vmul.f32 %v2471, %v2528
        %v2535 = vmul.f32 %v2472, %v2528
        %v2536 = vmul.f32 %v2473, %v2528
        %v2537 = vmul.f32 %v2474, %v2529
        %v2538 = vmul.f32 %v2475, %v2529
        %v2539 = vmul.f32 %v2476, %v2529
        %v2540 = vmul.f32 %v2477, %v2529
        %v2541 = vmul.f32 %v2478, %v2529
        %v2542 = vmul.f32 %v2479, %v2529
        %v2543 = vmul.f32 %v2480, %v2530
        %v2544 = vmul.f32 %v2481, %v2530
        %v2545 = vmul.f32 %v2482, %v2530
        %v2546 = vmul.f32 %v2483, %v2530
        %v2547 = vmul.f32 %v2484, %v2530
        %v2548 = vmul.f32 %v2485, %v2530
        %2549 = vst [vmem:[%s216] sm:$0xff] %v2531
        %2550 = vst [vmem:[%s216 + $0x8] sm:$0xff] %v2532
        %2551 = vst [vmem:[%s216 + $0x10] sm:$0xff] %v2533
        %2552 = vst [vmem:[%s216 + $0x18] sm:$0xff] %v2534
        %2553 = vst [vmem:[%s216 + $0x20] sm:$0xff] %v2535
        %2554 = vst [vmem:[%s216 + $0x28] sm:$0xff] %v2536
        %2555 = vst [vmem:[%s216 + $0x30] sm:$0xff] %v2537
        %2556 = vst [vmem:[%s216 + $0x38] sm:$0xff] %v2538
        %2557 = vst [vmem:[%s216 + $0x40] sm:$0xff] %v2539
        %2558 = vst [vmem:[%s216 + $0x48] sm:$0xff] %v2540
        %2559 = vst [vmem:[%s216 + $0x50] sm:$0xff] %v2541
        %2560 = vst [vmem:[%s216 + $0x58] sm:$0xff] %v2542
        %2561 = vst [vmem:[%s216 + $0x60] sm:$0xff] %v2543
        %2562 = vst [vmem:[%s216 + $0x68] sm:$0xff] %v2544
        %2563 = vst [vmem:[%s216 + $0x70] sm:$0xff] %v2545
        %2564 = vst [vmem:[%s216 + $0x78] sm:$0xff] %v2546
        %2565 = vst [vmem:[%s216 + $0x80] sm:$0xff] %v2547
        %2566 = vst [vmem:[%s216 + $0x88] sm:$0xff] %v2548
        %s2567 = sand.u32 %s97, 1
        %s2568 = scalar_lea.sflag [#allocation4], %s2567
        %s2569 = sand.u32 %s97, 1
        %s2570 = smul.addr %s2569, 144
        %s2571 = scalar_lea.vmem [#allocation8], %s2570
        // Predicated region
        $region45: #{tpu_custom_call.1} parent=31 // pred_check
          %p2572 = pneg %p107
        $region46: #{tpu_custom_call.1} parent=31 // pred_check_branch
          %2574 = sbr.rel (%p2572) target = $region48
        $region47: #{tpu_custom_call.1} parent=31 // pred_region
          %s2575 = smul.u32 3, %s21
          %s2577 = ssub.s32 2304, 2304
          %2578 = vsyncadd %s2568, %s2577
          %s2579 = smul.addr %s2575, 6
          %s2580 = smul.addr %s2579, 128
          %s2581 = scalar_lea.hbm %s3, %s2580
          %s2582 = sshll.u32 %s2571, 4
          %s2583 = int_to_ptr.vmem [resolvable:$true] %s2582
          %2588 = dma.vmem_to_hbm [thread:$0]  %s2583, 2304, %s2581, %s2568, 768, 768, 48
        $region48: #{tpu_custom_call.1} parent=31 // pred_fallthru
          _
      $region32: #{tpu_custom_call.1} parent=5 // pred_fallthru
        _
      %p2589 = scmp.le.s32.totalorder 2, %s16
      // Predicated region
      $region49: #{tpu_custom_call.1} parent=5 // pred_check
        %p2590 = pneg %p2589
      $region50: #{tpu_custom_call.1} parent=5 // pred_check_branch
        %2592 = sbr.rel (%p2590) target = $region52
      $region51: #{tpu_custom_call.1} parent=5 // pred_region
        %s2593 = ssub.s32 %s16, 2
        // Predicated region
        $region53: #{tpu_custom_call.1} parent=51 // pred_check
          %p2594 = pneg %p113
        $region54: #{tpu_custom_call.1} parent=51 // pred_check_branch
          %2596 = sbr.rel (%p2594) target = $region56
        $region55: #{tpu_custom_call.1} parent=51 // pred_region
          %s2597 = sand.u32 %s98, 1
          %s2598 = scalar_lea.sflag [#allocation4], %s2597
          %s2599 = sand.u32 %s98, 1
          %s2600 = smul.addr %s2599, 144
          %s2601 = scalar_lea.vmem [#allocation8], %s2600
          %2602 = dma.done %s2598, 2304
        $region56: #{tpu_custom_call.1} parent=51 // pred_fallthru
          _
      $region52: #{tpu_custom_call.1} parent=5 // pred_fallthru
        _
    $region6: #{tpu_custom_call.1} parent=1 // loop_footer
      %s20 = sadd.s32 1, %s16
    $region7: #{tpu_custom_call.1} parent=1 // loop_footer_branch
      %15 = sbr.rel target = $region3
    $region8: #{tpu_custom_call.1} parent=1 // loop_exit
      _
    %2603 = vsyncpa [#allocation3], 1
    %s2604 = scalar_lea.sflag [#allocation3], 1
    %2605 = vsyncpa %s2604, 1
    %2606 = vsyncpa [#allocation6], 1
    %2607 = vsyncpa [#allocation4], 1
    %s2608 = scalar_lea.sflag [#allocation4], 1
    %2609 = vsyncpa %s2608, 1

</llo_original>
